<compile_context>
chip_gen: v5e
topology: v5e:2x2
jax: 0.10.0
libtpu: 0.0.40
codegen_flags: <defaults>
</compile_context>

<pallas_src>
import functools

import jax
import jax.numpy as jnp
from jax.experimental import pallas as pl
from jax.experimental.pallas import tpu as pltpu

LANE = 128   # pad every in-kernel feature axis to a multiple of the TPU lane width


def _round_up(x, m):
    return (x + m - 1) // m * m


def _vmem_capacity_bytes():
    try:
        info = pltpu.get_tpu_info()
        cap = getattr(info, "vmem_capacity_bytes", None)
        if cap:
            return int(cap)
    except Exception:
        pass
    return 64 * 2 ** 20   # conservative fallback (v7x per-TC VMEM)


# ----------------------------------------------------------------------------
# Pallas kernel: the whole layer stack, fused.
# ----------------------------------------------------------------------------
def _stacked_gcn_kernel(ahat_ref, xw0_hbm, w_ref, b_ref, out_ref,
                        xact_ref, xw_ref, *, num_layers, row_tile,
                        valid_cols, ahat_resident):
    l = pl.program_id(0)   # layer index         (sequential)
    i = pl.program_id(1)   # Ahat row-tile index (sequential, carries the scratches)

    # --- per-layer prologue (row tile 0): materialize XW_l in bf16 VMEM once,
    #     reused by every Ahat row tile of this layer.
    @pl.when(jnp.logical_and(i == 0, l == 0))
    def _():
        # layer-0's X @ W0 was computed by XLA outside the kernel; copy HBM -> VMEM once.
        pltpu.sync_copy(xw0_hbm, xw_ref)

    @pl.when(jnp.logical_and(i == 0, l > 0))
    def _():
        xw_ref[...] = jnp.dot(xact_ref[...], w_ref[0],
                              preferred_element_type=jnp.float32
                              ).astype(jnp.bfloat16)

    # --- neighborhood aggregation for this row tile: Ahat[i] @ XW + b (MXU, f32 acc)
    if ahat_resident:
        row0 = pl.multiple_of(i * row_tile, row_tile)
        a_tile = ahat_ref[pl.ds(row0, row_tile), :]
    else:
        a_tile = ahat_ref[...]

    h = jnp.dot(a_tile, xw_ref[...], preferred_element_type=jnp.float32) + b_ref[0]

    is_last = l == num_layers - 1

    @pl.when(jnp.logical_not(is_last))
    def _():
        # hidden layer: ReLU, stash tile for the next layer (bf16, VMEM only — no HBM)
        row0 = pl.multiple_of(i * row_tile, row_tile)
        xact_ref[pl.ds(row0, row_tile), :] = jnp.maximum(h, 0.0).astype(jnp.bfloat16)

    @pl.when(is_last)
    def _():
        # log_softmax over dim=1, masking the zero-padded feature columns.
        col = jax.lax.broadcasted_iota(jnp.int32, h.shape, 1)
        hm = jnp.where(col < valid_cols, h, -jnp.inf)
        m = jnp.max(hm, axis=1, keepdims=True)
        s = hm - m
        lse = jnp.log(jnp.sum(jnp.exp(s), axis=1, keepdims=True))
        out_ref[...] = s - lse


# ----------------------------------------------------------------------------
# Glue: normalized adjacency (PyG gcn_norm with add_remaining_self_loops)
# ----------------------------------------------------------------------------
def build_norm_adj(edge_index, num_nodes):
    src, dst = edge_index[0], edge_index[1]
    w = jnp.ones(src.shape, jnp.float32)
    # add_remaining_self_loops: add a unit self-loop only for nodes lacking one.
    is_loop = (src == dst).astype(jnp.float32)
    has_loop = jnp.zeros((num_nodes,), jnp.float32).at[src].max(is_loop)
    loop_idx = jnp.arange(num_nodes, dtype=src.dtype)
    src = jnp.concatenate([src, loop_idx])
    dst = jnp.concatenate([dst, loop_idx])
    w = jnp.concatenate([w, 1.0 - has_loop])
    # degree at the aggregation (target) index, symmetric normalization
    deg = jnp.zeros((num_nodes,), jnp.float32).at[dst].add(w)
    dinv = jnp.where(deg > 0, jax.lax.rsqrt(deg), 0.0)
    norm = dinv[src] * w * dinv[dst]
    # aggregation at dst over incoming edges: Ahat[dst, src] += norm
    ahat = jnp.zeros((num_nodes, num_nodes), jnp.float32).at[dst, src].add(norm)
    return ahat


# ----------------------------------------------------------------------------
# StackedGCN forward
# ----------------------------------------------------------------------------
def init_params(layer_dims, key):
    """Glorot-uniform weights, small bias — matches GCNConv parameter shapes."""
    params = []
    for i in range(len(layer_dims) - 1):
        fin, fout = layer_dims[i], layer_dims[i + 1]
        key, kw, kb = jax.random.split(key, 3)
        limit = jnp.sqrt(6.0 / (fin + fout))
        w = jax.random.uniform(kw, (fin, fout), jnp.float32, -limit, limit)
        b = 0.1 * jax.random.normal(kb, (1, fout), jnp.float32)
        params.append((w, b))
    return params


def stacked_gcn_forward(edges, features, params, *, force_tiled_ahat=False):
    n, _ = features.shape
    num_layers = len(params)
    out_dims = [w.shape[1] for w, _ in params]
    c_out = out_dims[-1]

    # Only the hidden/output dims enter the kernel; the (possibly huge) input-channel
    # dim is consumed by the out-of-kernel layer-0 matmul.
    h_pad = _round_up(max(out_dims), LANE)
    row_tile = 256 if n > 128 else 128      # 256 fills v6e/v7x MXU; 128 for tiny graphs
    n_pad = _round_up(n, row_tile)
    num_row_tiles = n_pad // row_tile

    vmem_cap = _vmem_capacity_bytes()

    # --- build & zero-pad inputs (bf16 feeds the MXU; accumulation stays f32) ---
    ahat = build_norm_adj(edges, n).astype(jnp.bfloat16)
    ahat_p = jnp.zeros((n_pad, n_pad), jnp.bfloat16).at[:n, :n].set(ahat)

    # Layer-0's XW computed outside the kernel by one XLA matmul (bf16 in, f32 acc).
    w0, b0 = params[0]
    xw0 = jnp.dot(features.astype(jnp.bfloat16), w0.astype(jnp.bfloat16),
                  preferred_element_type=jnp.float32).astype(jnp.bfloat16)
    xw0_p = jnp.zeros((n_pad, h_pad), jnp.bfloat16).at[:n, :w0.shape[1]].set(xw0)

    # W stack: slot 0 is unused (layer 0 handled outside); slots 1.. hold W_1..W_{L-1}.
    w_stack = jnp.zeros((num_layers, h_pad, h_pad), jnp.bfloat16)
    b_stack = jnp.zeros((num_layers, 1, h_pad), jnp.float32)
    b_stack = b_stack.at[0, :, :b0.shape[1]].set(b0)
    for li in range(1, num_layers):
        w, b = params[li]
        w_stack = w_stack.at[li, :w.shape[0], :w.shape[1]].set(w.astype(jnp.bfloat16))
        b_stack = b_stack.at[li, :, :b.shape[1]].set(b.astype(jnp.float32))

    # Ahat residency: DMA once if the (double-buffered) full matrix fits the budget.
    ahat_full_bytes = 2 * n_pad * n_pad * 2
    ahat_resident = (not force_tiled_ahat) and (ahat_full_bytes <= 0.4 * vmem_cap)
    if ahat_resident:
        ahat_spec = pl.BlockSpec((n_pad, n_pad), lambda l, i: (0, 0))
        ahat_vmem = ahat_full_bytes
    else:
        ahat_spec = pl.BlockSpec((row_tile, n_pad), lambda l, i: (i, 0))
        ahat_vmem = 2 * row_tile * n_pad * 2

    est = (ahat_vmem
           + 2 * h_pad * h_pad * 2          # W[l] blocks (double-buffered bf16)
           + 2 * h_pad * 4                  # b[l]
           + 2 * row_tile * h_pad * 4       # output blocks (f32)
           + 2 * n_pad * h_pad * 2)         # xact + xw scratches (bf16)
    vmem_limit = int(min(max(2 * est, 32 * 2 ** 20), int(0.8 * vmem_cap)))

    kernel = functools.partial(_stacked_gcn_kernel, num_layers=num_layers,
                               row_tile=row_tile, valid_cols=c_out,
                               ahat_resident=ahat_resident)

    # Non-last layers never write out_ref; collapse their output block index to 0 so
    # hidden layers cause no HBM output writeback.
    def out_index_map(l, i):
        return (jnp.where(l == num_layers - 1, i, 0), 0)

    out_p = pl.pallas_call(
        kernel,
        out_shape=jax.ShapeDtypeStruct((n_pad, h_pad), jnp.float32),
        grid_spec=pltpu.PrefetchScalarGridSpec(
            num_scalar_prefetch=0,
            grid=(num_layers, num_row_tiles),
            in_specs=[
                ahat_spec,                                                 # Ahat
                pl.BlockSpec(memory_space=pl.ANY),                         # XW0 (HBM)
                pl.BlockSpec((1, h_pad, h_pad), lambda l, i: (l, 0, 0)),   # W[l]
                pl.BlockSpec((1, 1, h_pad), lambda l, i: (l, 0, 0)),       # b[l]
            ],
            out_specs=pl.BlockSpec((row_tile, h_pad), out_index_map),
            scratch_shapes=[
                pltpu.VMEM((n_pad, h_pad), jnp.bfloat16),   # layer activation (carried)
                pltpu.VMEM((n_pad, h_pad), jnp.bfloat16),   # XW of current layer
            ],
        ),
        compiler_params=pltpu.CompilerParams(
            dimension_semantics=("arbitrary", "arbitrary"),
            vmem_limit_bytes=vmem_limit,
        ),
    )(ahat_p, xw0_p, w_stack, b_stack)

    return out_p[:n, :c_out]


# ----------------------------------------------------------------------------
# Pure-JAX reference replicating the kernel's bf16-matmul / f32-accumulate policy
# ----------------------------------------------------------------------------
def _reference_forward(edges, features, params):
    n = features.shape[0]
    ahat = build_norm_adj(edges, n).astype(jnp.bfloat16)
    x = features.astype(jnp.float32)
    out = None
    for li, (w, b) in enumerate(params):
        xw = jnp.dot(x.astype(jnp.bfloat16), w.astype(jnp.bfloat16),
                     preferred_element_type=jnp.float32)
        h = jnp.dot(ahat, xw.astype(jnp.bfloat16),
                    preferred_element_type=jnp.float32) + b
        if li < len(params) - 1:
            x = jnp.maximum(h, 0.0)
        else:
            out = jax.nn.log_softmax(h, axis=1)
    return out


if __name__ == "__main__":
    key = jax.random.PRNGKey(0)

    # small synthetic graph: 300 nodes, 1500 directed edges, 16 input features
    num_nodes = 300
    num_edges = 1500
    input_channels = 16
    hidden_layers = [32, 32]          # `layers` arg of StackedGCN
    output_channels = 7

    k_edges, k_feat, k_params = jax.random.split(key, 3)
    edges = jax.random.randint(k_edges, (2, num_edges), 0, num_nodes, jnp.int32)
    features = jax.random.normal(k_feat, (num_nodes, input_channels), jnp.float32)

    layer_dims = [input_channels] + hidden_layers + [output_channels]
    params = init_params(layer_dims, k_params)

    ref = _reference_forward(edges, features, params)

    # resident-Ahat path (default for this size)
    out = stacked_gcn_forward(edges, features, params)
    out = jax.block_until_ready(out)
    assert out.shape == (num_nodes, output_channels)
    assert bool(jnp.all(jnp.isfinite(out)))
    assert jnp.allclose(out, ref, atol=2e-3, rtol=2e-3), \
        float(jnp.max(jnp.abs(out - ref)))

    # row-tiled-Ahat fallback path (used for graphs too large for residency)
    out_t = stacked_gcn_forward(edges, features, params, force_tiled_ahat=True)
    out_t = jax.block_until_ready(out_t)
    assert jnp.allclose(out_t, ref, atol=2e-3, rtol=2e-3), \
        float(jnp.max(jnp.abs(out_t - ref)))

    print("KERNEL_OK")
</pallas_src>

<mosaic_0001>
module attributes {stable_mosaic.version = 11 : i64} {
  func.func @_stacked_gcn_kernel(%arg0: i32, %arg1: i32, %arg2: memref<512x512xbf16, #tpu.memory_space<vmem>>, %arg3: memref<512x128xbf16, #tpu.memory_space<any>>, %arg4: memref<1x128x128xbf16, #tpu.memory_space<vmem>>, %arg5: memref<1x1x128xf32, #tpu.memory_space<vmem>>, %arg6: memref<256x128xf32, #tpu.memory_space<vmem>>, %arg7: memref<512x128xbf16, #tpu.memory_space<vmem>>, %arg8: memref<512x128xbf16, #tpu.memory_space<vmem>>) attributes {dimension_semantics = [#tpu.dimension_semantics<arbitrary>, #tpu.dimension_semantics<arbitrary>], iteration_bounds = array<i64: 3, 2>, scalar_prefetch = 0 : i64, scratch_operands = 2 : i64, tpu.core_type = #tpu.core_type<tc>, window_params = [{pipeline_mode = #tpu.pipeline_mode<synchronous>, transform_indices = @transform_0, window_bounds = array<i64: 512, 512>}, {}, {transform_indices = @transform_2, window_bounds = array<i64: 1, 128, 128>}, {transform_indices = @transform_3, window_bounds = array<i64: 1, 1, 128>}, {transform_indices = @transform_4, window_bounds = array<i64: 256, 128>}]} {
    %c0_i32 = arith.constant 0 : i32
    %0 = arith.cmpi eq, %arg1, %c0_i32 : i32
    %c0_i32_0 = arith.constant 0 : i32
    %1 = arith.cmpi eq, %arg0, %c0_i32_0 : i32
    %2 = arith.andi %0, %1 : i1
    %3 = arith.extui %2 : i1 to i32
    %c0_i32_1 = arith.constant 0 : i32
    %4 = arith.cmpi ne, %3, %c0_i32_1 : i32
    scf.if %4 {
      "tpu.region"() ({
        %26 = tpu.sem_alloc : memref<!tpu.dma_semaphore, #tpu.memory_space<semaphore_mem>>
        tpu.enqueue_dma source(%arg3 : memref<512x128xbf16, #tpu.memory_space<any>>) target(%arg8 : memref<512x128xbf16, #tpu.memory_space<vmem>>) target_semaphore(%26 : memref<!tpu.dma_semaphore, #tpu.memory_space<semaphore_mem>>)
        tpu.wait_dma2 semaphore(%26 : memref<!tpu.dma_semaphore, #tpu.memory_space<semaphore_mem>>) src(%arg3 : memref<512x128xbf16, #tpu.memory_space<any>>) dst(%arg8 : memref<512x128xbf16, #tpu.memory_space<vmem>>)
        tpu.yield
      }) : () -> ()
    } else {
    }
    %c0_i32_2 = arith.constant 0 : i32
    %5 = arith.cmpi eq, %arg1, %c0_i32_2 : i32
    %c0_i32_3 = arith.constant 0 : i32
    %6 = arith.cmpi sgt, %arg0, %c0_i32_3 : i32
    %7 = arith.andi %5, %6 : i1
    %8 = arith.extui %7 : i1 to i32
    %c0_i32_4 = arith.constant 0 : i32
    %9 = arith.cmpi ne, %8, %c0_i32_4 : i32
    scf.if %9 {
      %c0_12 = arith.constant 0 : index
      %c0_13 = arith.constant 0 : index
      %26 = vector.load %arg7[%c0_12, %c0_13] : memref<512x128xbf16, #tpu.memory_space<vmem>>, vector<512x128xbf16>
      %c0_14 = arith.constant 0 : index
      %c0_15 = arith.constant 0 : index
      %c0_16 = arith.constant 0 : index
      %27 = vector.load %arg4[%c0_14, %c0_15, %c0_16] : memref<1x128x128xbf16, #tpu.memory_space<vmem>>, vector<1x128x128xbf16>
      %28 = vector.shape_cast %27 : vector<1x128x128xbf16> to vector<128x128xbf16>
      %cst_17 = arith.constant dense<0.000000e+00> : vector<512x128xf32>
      %29 = tpu.matmul %26, %28, %cst_17 {dimension_numbers = #tpu.dot_dimension_numbers<[1], [0], [0], [1], [0, 0, 1, 1], [], []>} : vector<512x128xbf16>, vector<128x128xbf16>, vector<512x128xf32> -> vector<512x128xf32>
      %30 = arith.truncf %29 : vector<512x128xf32> to vector<512x128xbf16>
      %c0_18 = arith.constant 0 : index
      %c0_19 = arith.constant 0 : index
      %31 = vector.load %arg8[%c0_18, %c0_19] : memref<512x128xbf16, #tpu.memory_space<vmem>>, vector<512x128xbf16>
      tpu.vector_store %arg8[%c0_18, %c0_19], %30 {strides = array<i32>} : memref<512x128xbf16, #tpu.memory_space<vmem>>, vector<512x128xbf16>,
    } else {
    }
    %c256_i32 = arith.constant 256 : i32
    %10 = arith.muli %arg1, %c256_i32 : i32
    %11 = tpu.assume_multiple %10, 256 : i32
    %12 = arith.index_cast %11 : i32 to index
    %c0 = arith.constant 0 : index
    %13 = vector.load %arg2[%12, %c0] : memref<512x512xbf16, #tpu.memory_space<vmem>>, vector<256x512xbf16>
    %c0_5 = arith.constant 0 : index
    %c0_6 = arith.constant 0 : index
    %14 = vector.load %arg8[%c0_5, %c0_6] : memref<512x128xbf16, #tpu.memory_space<vmem>>, vector<512x128xbf16>
    %cst = arith.constant dense<0.000000e+00> : vector<256x128xf32>
    %15 = tpu.matmul %13, %14, %cst {dimension_numbers = #tpu.dot_dimension_numbers<[1], [0], [0], [1], [0, 0, 1, 1], [], []>} : vector<256x512xbf16>, vector<512x128xbf16>, vector<256x128xf32> -> vector<256x128xf32>
    %c0_7 = arith.constant 0 : index
    %c0_8 = arith.constant 0 : index
    %c0_9 = arith.constant 0 : index
    %16 = vector.load %arg5[%c0_7, %c0_8, %c0_9] : memref<1x1x128xf32, #tpu.memory_space<vmem>>, vector<1x1x128xf32>
    %17 = vector.shape_cast %16 : vector<1x1x128xf32> to vector<1x128xf32>
    %18 = vector.broadcast %17 : vector<1x128xf32> to vector<256x128xf32>
    %19 = arith.addf %15, %18 : vector<256x128xf32>
    %c2_i32 = arith.constant 2 : i32
    %20 = arith.cmpi eq, %arg0, %c2_i32 : i32
    %true = arith.constant true
    %21 = arith.xori %20, %true : i1
    %22 = arith.extui %21 : i1 to i32
    %c0_i32_10 = arith.constant 0 : i32
    %23 = arith.cmpi ne, %22, %c0_i32_10 : i32
    scf.if %23 {
      %c256_i32_12 = arith.constant 256 : i32
      %26 = arith.muli %arg1, %c256_i32_12 : i32
      %27 = tpu.assume_multiple %26, 256 : i32
      %cst_13 = arith.constant 0.000000e+00 : f32
      %28 = vector.broadcast %cst_13 : f32 to vector<256x128xf32>
      %29 = arith.maximumf %19, %28 : vector<256x128xf32>
      %30 = arith.truncf %29 : vector<256x128xf32> to vector<256x128xbf16>
      %31 = arith.index_cast %27 : i32 to index
      %c0_14 = arith.constant 0 : index
      %32 = vector.load %arg7[%31, %c0_14] : memref<512x128xbf16, #tpu.memory_space<vmem>>, vector<256x128xbf16>
      tpu.vector_store %arg7[%31, %c0_14], %30 {strides = array<i32>} : memref<512x128xbf16, #tpu.memory_space<vmem>>, vector<256x128xbf16>,
    } else {
    }
    %24 = arith.extui %20 : i1 to i32
    %c0_i32_11 = arith.constant 0 : i32
    %25 = arith.cmpi ne, %24, %c0_i32_11 : i32
    scf.if %25 {
      %26 = tpu.iota {dimensions = array<i32: 1>} : vector<256x128xi32>
      %c7_i32 = arith.constant 7 : i32
      %27 = vector.broadcast %c7_i32 : i32 to vector<256x128xi32>
      %28 = arith.cmpi slt, %26, %27 : vector<256x128xi32>
      %cst_12 = arith.constant 0xFF800000 : f32
      %29 = vector.broadcast %cst_12 : f32 to vector<256x128xf32>
      %30 = arith.select %28, %19, %29 : vector<256x128xi1>, vector<256x128xf32>
      %cst_13 = arith.constant dense<0xFF800000> : vector<256xf32>
      %31 = vector.multi_reduction <maximumf>, %30, %cst_13 [1] : vector<256x128xf32> to vector<256xf32>
      %32 = vector.shape_cast %31 : vector<256xf32> to vector<256x1xf32>
      %33 = vector.broadcast %32 : vector<256x1xf32> to vector<256x128xf32>
      %34 = arith.subf %30, %33 : vector<256x128xf32>
      %35 = math.exp %34 : vector<256x128xf32>
      %cst_14 = arith.constant dense<0.000000e+00> : vector<256xf32>
      %36 = vector.multi_reduction <add>, %35, %cst_14 [1] : vector<256x128xf32> to vector<256xf32>
      %37 = vector.shape_cast %36 : vector<256xf32> to vector<256x1xf32>
      %38 = math.log %37 : vector<256x1xf32>
      %39 = vector.broadcast %38 : vector<256x1xf32> to vector<256x128xf32>
      %40 = arith.subf %34, %39 : vector<256x128xf32>
      %c0_15 = arith.constant 0 : index
      %c0_16 = arith.constant 0 : index
      %41 = vector.load %arg6[%c0_15, %c0_16] : memref<256x128xf32, #tpu.memory_space<vmem>>, vector<256x128xf32>
      tpu.vector_store %arg6[%c0_15, %c0_16], %40 {strides = array<i32>} : memref<256x128xf32, #tpu.memory_space<vmem>>, vector<256x128xf32>,
    } else {
    }
    return
  }
  func.func @transform_0(%arg0: i32, %arg1: i32) -> (i32, i32) {
    %c0_i32 = arith.constant 0 : i32
    %c0_i32_0 = arith.constant 0 : i32
    %c0_i32_1 = arith.constant 0 : i32
    return %c0_i32, %c0_i32_0 : i32, i32
  }
  func.func @transform_2(%arg0: i32, %arg1: i32) -> (i32, i32, i32) {
    %c0_i32 = arith.constant 0 : i32
    %c0_i32_0 = arith.constant 0 : i32
    %c0_i32_1 = arith.constant 0 : i32
    return %arg0, %c0_i32, %c0_i32_0 : i32, i32, i32
  }
  func.func @transform_3(%arg0: i32, %arg1: i32) -> (i32, i32, i32) {
    %c0_i32 = arith.constant 0 : i32
    %c0_i32_0 = arith.constant 0 : i32
    %c0_i32_1 = arith.constant 0 : i32
    return %arg0, %c0_i32, %c0_i32_0 : i32, i32, i32
  }
  func.func @transform_4(%arg0: i32, %arg1: i32) -> (i32, i32) {
    %c2_i32 = arith.constant 2 : i32
    %0 = arith.cmpi eq, %arg0, %c2_i32 : i32
    %c0_i32 = arith.constant 0 : i32
    %1 = arith.select %0, %arg1, %c0_i32 : i32
    %c0_i32_0 = arith.constant 0 : i32
    %c0_i32_1 = arith.constant 0 : i32
    return %1, %c0_i32_0 : i32, i32
  }
}

</mosaic_0001>

<llo_original>
// kernel: tpu_custom_call.1
$region0: #{tpu_custom_call.1}
  #allocation0 [shape = 'u32[]', space=smem, size = 0x4, offset = 0x4, fixed_abs, tag = 'smem constant byte address 0x4 - core index']
  #allocation1 [shape = 'u32[72,128]{1,0:T(1,128)}', space=vmem, size = 0x9000, scoped, tag = 'internal scratch']
  #allocation2 [shape = 'bf16[512,128]{1,0:T(8,128)(2,1)}', space=vmem, size = 0x20000, scoped, tag = 'scratch operand']
  #allocation3 [shape = 'bf16[512,128]{1,0:T(8,128)(2,1)}', space=vmem, size = 0x20000, scoped, tag = 'scratch operand']
  #allocation12 [shape = 's32[]', space=sflag, size = 0x4, offset = 0, fixed_abs, tag = 'sflag constant byte address 0x0 - dummy sync flag']
  #allocation13 [shape = 's32[]', space=sflag, size = 0x4, offset = 0, fixed_abs, tag = 'sflag constant byte address 0x0 - dummy sync flag']
  #allocation14 [shape = 'u32[]', space=smem, size = 0x4, offset = 0x44, fixed_abs, tag = 'smem constant byte address 0x44 - assertion arg 0']
  #allocation15 [shape = 'u32[]', space=smem, size = 0x4, offset = 0x48, fixed_abs, tag = 'smem constant byte address 0x48 - assertion arg 1']
  %s0 = inlined_call_operand.hbm [shape: bf16[512,512], index: 0, kind: input, shape index: {}]
  %s1 = inlined_call_operand.hbm [shape: bf16[512,128], index: 1, kind: input, shape index: {}]
  %s2 = inlined_call_operand.hbm [shape: bf16[3,128,128], index: 2, kind: input, shape index: {}]
  %s3 = inlined_call_operand.hbm [shape: f32[3,1,128], index: 3, kind: input, shape index: {}]
  %s4 = inlined_call_operand.hbm [shape: f32[512,128], index: 4, kind: output, shape index: {}]
  %s5 = sld [smem:[#allocation0]]
  $region78: #{tpu_custom_call.1} parent=0
    _
  %s7 = ssub.s32 1, %s5
  %s8 = scalar_select 0, %s7, %s5
  $region1: #{tpu_custom_call.1} parent=0
    #allocation4 [shape = 'u8[524288]{0}', space=vmem, size = 0x80000, scoped, tag = 'input window, operand 0, single buffered']
    #allocation5 [shape = 's32[2]{0}', space=sflag, size = 0x8, scoped, tag = 'scoped memory for tpu_custom_call.1']
    #allocation6 [shape = 's32[2]{0}', space=sflag, size = 0x8, scoped, tag = 'scoped memory for tpu_custom_call.1']
    #allocation7 [shape = 'u8[65536]{0}', space=vmem, size = 0x10000, scoped, tag = 'input window, operand 2']
    #allocation8 [shape = 's32[2]{0}', space=sflag, size = 0x8, scoped, tag = 'scoped memory for tpu_custom_call.1']
    #allocation9 [shape = 'u8[1024]{0}', space=vmem, size = 0x400, scoped, tag = 'input window, operand 3']
    #allocation10 [shape = 'u8[262144]{0}', space=vmem, size = 0x40000, scoped, tag = 'output window, operand 0']
    %9 = vsyncpa [#allocation5], 0
    %10 = vsyncpa [#allocation8], 0
    %s11 = scalar_lea.sflag [#allocation8], 1
    %12 = vsyncpa %s11, 0
    %13 = vsyncpa [#allocation6], 0
    %s14 = scalar_lea.sflag [#allocation6], 1
    %15 = vsyncpa %s14, 0
    loop: start=0, step=1, limit=8
    $region2: #{tpu_custom_call.1} parent=1 // loop_pre_header
      _
    $region3: #{tpu_custom_call.1} parent=1 // loop_header
      %s17 = sphi 0, %s21
      %p18 = scmp.ge.s32.totalorder %s17, 8
      %s24 = sphi 0, %s36
      %s25 = sphi 0, %s32
      %s26 = sphi 0, %s24
      %s27 = sphi 0, %s25
      %s28 = sphi 0, %s26
      %s29 = sphi 0, %s27
      %s37 = sphi 0, %s37
      %s39 = sphi 0, %s37
      %s40 = sphi 0, %s39
      %s54 = sphi 0, %s40
      %s60 = sphi 0, %s62
      %s63 = sphi 0, %s60
      %s64 = sphi 0, %s63
      %s80 = sphi 0, %s64
      %s86 = sphi 0, %s88
      %s89 = sphi 0, %s86
      %s90 = sphi 0, %s89
      %s106 = sphi 0, %s90
      %s116 = sphi 0, %s118
      %s119 = sphi 0, %s116
      %s120 = sphi 0, %s119
      %s136 = sphi 0, %s120
    $region4: #{tpu_custom_call.1} parent=1 // loop_header_branch
      %20 = sbr.rel (%p18) target = $region8
    $region5: #{tpu_custom_call.1} parent=1 // loop_body
      %s22 = ssub.s32 %s17, 1
      %s23 = ssub.s32 %s17, 2
      %s30 = sadd.s32 1, %s25
      %p31 = scmp.ge.s32.totalorder %s30, 2
      %s32 = scalar_select %p31, 0, %s30
      %s33 = sadd.s32 1, %s24
      %s34 = scalar_select %p31, %s33, %s24
      %p35 = scmp.ge.s32.totalorder %s34, 3
      %s36 = scalar_select %p35, 0, %s34
      %s38 = sadd.s32 %s37, 1
      %p41 = scmp.eq.s32.totalorder %s17, 5
      %p42 = scmp.ne.s32.totalorder %s37, %s39
      %p43 = scmp.eq.s32.totalorder %s17, 0
      %p44 = por %p42, %p43
      %p45 = scmp.ne.s32.totalorder %s37, %s39
      %p46 = scmp.eq.s32.totalorder %s22, 5
      %p47 = por %p45, %p46
      %p48 = scmp.ne.s32.totalorder %s39, %s40
      %p49 = scmp.eq.s32.totalorder %s22, 0
      %p50 = por %p48, %p49
      %p51 = scmp.ne.s32.totalorder %s39, %s40
      %p52 = scmp.eq.s32.totalorder %s23, 5
      %p53 = por %p51, %p52
      %p55 = scmp.ne.s32.totalorder %s40, %s54
      %p56 = scmp.eq.s32.totalorder %s23, 0
      %p57 = por %p55, %p56
      %s58 = ssub.s32 %s24, %s36
      %p59 = scmp.eq.s32.totalorder %s58, 0
      %s61 = sadd.s32 %s60, 1
      %s62 = scalar_select %p59, %s60, %s61
      %p65 = pneg %p59
      %p66 = scmp.eq.s32.totalorder %s17, 5
      %p67 = por %p65, %p66
      %p68 = scmp.ne.s32.totalorder %s60, %s63
      %p69 = scmp.eq.s32.totalorder %s17, 0
      %p70 = por %p68, %p69
      %p71 = scmp.ne.s32.totalorder %s60, %s63
      %p72 = scmp.eq.s32.totalorder %s22, 5
      %p73 = por %p71, %p72
      %p74 = scmp.ne.s32.totalorder %s63, %s64
      %p75 = scmp.eq.s32.totalorder %s22, 0
      %p76 = por %p74, %p75
      %p77 = scmp.ne.s32.totalorder %s63, %s64
      %p78 = scmp.eq.s32.totalorder %s23, 5
      %p79 = por %p77, %p78
      %p81 = scmp.ne.s32.totalorder %s64, %s80
      %p82 = scmp.eq.s32.totalorder %s23, 0
      %p83 = por %p81, %p82
      %s84 = ssub.s32 %s24, %s36
      %p85 = scmp.eq.s32.totalorder %s84, 0
      %s87 = sadd.s32 %s86, 1
      %s88 = scalar_select %p85, %s86, %s87
      %p91 = pneg %p85
      %p92 = scmp.eq.s32.totalorder %s17, 5
      %p93 = por %p91, %p92
      %p94 = scmp.ne.s32.totalorder %s86, %s89
      %p95 = scmp.eq.s32.totalorder %s17, 0
      %p96 = por %p94, %p95
      %p97 = scmp.ne.s32.totalorder %s86, %s89
      %p98 = scmp.eq.s32.totalorder %s22, 5
      %p99 = por %p97, %p98
      %p100 = scmp.ne.s32.totalorder %s89, %s90
      %p101 = scmp.eq.s32.totalorder %s22, 0
      %p102 = por %p100, %p101
      %p103 = scmp.ne.s32.totalorder %s89, %s90
      %p104 = scmp.eq.s32.totalorder %s23, 5
      %p105 = por %p103, %p104
      %p107 = scmp.ne.s32.totalorder %s90, %s106
      %p108 = scmp.eq.s32.totalorder %s23, 0
      %p109 = por %p107, %p108
      %p110 = scmp.eq.s32.totalorder %s24, 2
      %s111 = scalar_select %p110, %s25, 0
      %p112 = scmp.eq.s32.totalorder %s36, 2
      %s113 = scalar_select %p112, %s32, 0
      %s114 = ssub.s32 %s111, %s113
      %p115 = scmp.eq.s32.totalorder %s114, 0
      %s117 = sadd.s32 %s116, 1
      %s118 = scalar_select %p115, %s116, %s117
      %p121 = pneg %p115
      %p122 = scmp.eq.s32.totalorder %s17, 5
      %p123 = por %p121, %p122
      %p124 = scmp.ne.s32.totalorder %s116, %s119
      %p125 = scmp.eq.s32.totalorder %s17, 0
      %p126 = por %p124, %p125
      %p127 = scmp.ne.s32.totalorder %s116, %s119
      %p128 = scmp.eq.s32.totalorder %s22, 5
      %p129 = por %p127, %p128
      %p130 = scmp.ne.s32.totalorder %s119, %s120
      %p131 = scmp.eq.s32.totalorder %s22, 0
      %p132 = por %p130, %p131
      %p133 = scmp.ne.s32.totalorder %s119, %s120
      %p134 = scmp.eq.s32.totalorder %s23, 5
      %p135 = por %p133, %p134
      %p137 = scmp.ne.s32.totalorder %s120, %s136
      %p138 = scmp.eq.s32.totalorder %s23, 0
      %p139 = por %p137, %p138
      %p140 = scmp.le.s32.totalorder 1, %s17
      %p141 = scmp.lt.s32.totalorder %s17, 7
      %p142 = pnand %p140, %p141
      %p143 = pneg %p142
      // Predicated region
      $region9: #{tpu_custom_call.1} parent=5 // pred_check
        _
      $region10: #{tpu_custom_call.1} parent=5 // pred_check_branch
        %145 = sbr.rel (%p142) target = $region12
      $region11: #{tpu_custom_call.1} parent=5 // pred_region
        %s146 = ssub.s32 %s17, 1
        // Predicated region
        $region13: #{tpu_custom_call.1} parent=11 // pred_check
          %p147 = pneg %p50
        $region14: #{tpu_custom_call.1} parent=11 // pred_check_branch
          %149 = sbr.rel (%p147) target = $region16
        $region15: #{tpu_custom_call.1} parent=11 // pred_region
          %151 = vsyncadd [#allocation5], 0
          %s152 = sshll.u32 %s0, 4
          %s153 = int_to_ptr.hbm [resolvable:$true] %s152
          %s154 = sshll.u32 [#allocation4], 4
          %s155 = int_to_ptr.vmem [resolvable:$true] %s154
          %160 = dma.hbm_to_vmem [thread:$0]  %s153, 16384, %s155, [#allocation5], 256, 256, 16
        $region16: #{tpu_custom_call.1} parent=11 // pred_fallthru
          _
      $region12: #{tpu_custom_call.1} parent=5 // pred_fallthru
        _
      %p161 = scmp.lt.s32.totalorder %s17, 6
      // Predicated region
      $region17: #{tpu_custom_call.1} parent=5 // pred_check
        %p162 = pneg %p161
      $region18: #{tpu_custom_call.1} parent=5 // pred_check_branch
        %164 = sbr.rel (%p162) target = $region20
      $region19: #{tpu_custom_call.1} parent=5 // pred_region
        // Predicated region
        $region21: #{tpu_custom_call.1} parent=19 // pred_check
          %p165 = pneg %p70
        $region22: #{tpu_custom_call.1} parent=19 // pred_check_branch
          %167 = sbr.rel (%p165) target = $region24
        $region23: #{tpu_custom_call.1} parent=19 // pred_region
          %s168 = sand.u32 %s17, 1
          %s169 = scalar_lea.sflag [#allocation8], %s168
          %s170 = sand.u32 %s60, 1
          %s171 = smul.addr %s170, 64
          %s172 = scalar_lea.vmem [#allocation7], %s171
          %174 = vsyncadd %s169, 0
          %s175 = smul.addr %s24, 16
          %s176 = smul.addr %s175, 4
          %s177 = scalar_lea.hbm %s2, %s176
          %s178 = sshll.u32 %s177, 4
          %s179 = int_to_ptr.hbm [resolvable:$true] %s178
          %s180 = sshll.u32 %s172, 4
          %s181 = int_to_ptr.vmem [resolvable:$true] %s180
          %186 = dma.hbm_to_vmem [thread:$0]  %s179, 1024, %s181, %s169, 64, 64, 4
        $region24: #{tpu_custom_call.1} parent=19 // pred_fallthru
          _
        // Predicated region
        $region25: #{tpu_custom_call.1} parent=19 // pred_check
          %p187 = pneg %p96
        $region26: #{tpu_custom_call.1} parent=19 // pred_check_branch
          %189 = sbr.rel (%p187) target = $region28
        $region27: #{tpu_custom_call.1} parent=19 // pred_region
          %s190 = sand.u32 %s17, 1
          %s191 = scalar_lea.sflag [#allocation8], %s190
          %s192 = sand.u32 %s86, 1
          %s193 = scalar_lea.vmem [#allocation9], %s192
          %195 = vsyncadd %s191, 0
          %s196 = scalar_lea.hbm %s3, %s24
          %s198 = sshll.u32 %s196, 4
          %s199 = int_to_ptr.hbm [resolvable:$true] %s198
          %s200 = sshll.u32 %s193, 4
          %s201 = int_to_ptr.vmem [resolvable:$true] %s200
          %203 = dma.hbm_to_vmem [thread:$0]  %s199, 16, %s201, %s191
        $region28: #{tpu_custom_call.1} parent=19 // pred_fallthru
          _
      $region20: #{tpu_custom_call.1} parent=5 // pred_fallthru
        _
      %p204 = scmp.le.s32.totalorder 1, %s17
      %p205 = scmp.lt.s32.totalorder %s17, 7
      %p206 = pnand %p204, %p205
      %p207 = pneg %p206
      // Predicated region
      $region29: #{tpu_custom_call.1} parent=5 // pred_check
        _
      $region30: #{tpu_custom_call.1} parent=5 // pred_check_branch
        %209 = sbr.rel (%p206) target = $region32
      $region31: #{tpu_custom_call.1} parent=5 // pred_region
        %s210 = ssub.s32 %s17, 1
        // Predicated region
        $region33: #{tpu_custom_call.1} parent=31 // pred_check
          %p211 = pneg %p50
        $region34: #{tpu_custom_call.1} parent=31 // pred_check_branch
          %213 = sbr.rel (%p211) target = $region36
        $region35: #{tpu_custom_call.1} parent=31 // pred_region
          %215 = dma.done [#allocation5], 16384
        $region36: #{tpu_custom_call.1} parent=31 // pred_fallthru
          _
        %s216 = sand.u32 %s22, 1
        %s217 = scalar_lea.sflag [#allocation8], %s216
        %s218 = sand.u32 %s63, 1
        %s219 = smul.addr %s218, 64
        %s220 = scalar_lea.vmem [#allocation7], %s219
        // Predicated region
        $region37: #{tpu_custom_call.1} parent=31 // pred_check
          %p221 = pneg %p76
        $region38: #{tpu_custom_call.1} parent=31 // pred_check_branch
          %223 = sbr.rel (%p221) target = $region40
        $region39: #{tpu_custom_call.1} parent=31 // pred_region
          %225 = dma.done %s217, 1024
        $region40: #{tpu_custom_call.1} parent=31 // pred_fallthru
          _
        %s226 = sand.u32 %s22, 1
        %s227 = scalar_lea.sflag [#allocation8], %s226
        %s228 = sand.u32 %s89, 1
        %s229 = scalar_lea.vmem [#allocation9], %s228
        // Predicated region
        $region41: #{tpu_custom_call.1} parent=31 // pred_check
          %p230 = pneg %p102
        $region42: #{tpu_custom_call.1} parent=31 // pred_check_branch
          %232 = sbr.rel (%p230) target = $region44
        $region43: #{tpu_custom_call.1} parent=31 // pred_region
          %234 = dma.done %s227, 16
        $region44: #{tpu_custom_call.1} parent=31 // pred_fallthru
          _
        %p235 = pneg %p50
        %p236 = pneg %p47
        %s237 = sand.u32 %s22, 1
        %s238 = scalar_lea.sflag [#allocation8], %s237
        %s239 = sand.u32 %s63, 1
        %s240 = smul.addr %s239, 64
        %s241 = scalar_lea.vmem [#allocation7], %s240
        %p242 = pneg %p76
        %p243 = pneg %p73
        %s244 = sand.u32 %s22, 1
        %s245 = scalar_lea.sflag [#allocation8], %s244
        %s246 = sand.u32 %s89, 1
        %s247 = scalar_lea.vmem [#allocation9], %s246
        %p248 = pneg %p102
        %p249 = pneg %p99
        %p250 = pneg %p132
        %p251 = pneg %p129
        %s252 = sand.u32 %s119, 1
        %s253 = scalar_lea.sflag [#allocation6], %s252
        %s254 = sand.u32 %s119, 1
        %s255 = smul.addr %s254, 256
        %s256 = scalar_lea.vmem [#allocation10], %s255
        %p257 = scmp.eq.s32.totalorder %s26, 2
        %s258 = scalar_select %p257, %s27, 0
        %s259 = smul.u32 32, %s258
        %p260 = scmp.eq.s32.totalorder %s27, 0
        %p261 = scmp.eq.s32.totalorder %s26, 0
        %p262 = pnand %p260, %p261
        %p263 = pneg %p262
        // Predicated region
        $region45: #{tpu_custom_call.1} parent=31 // pred_check
          _
        $region46: #{tpu_custom_call.1} parent=31 // pred_check_branch
          %265 = sbr.rel (%p262) target = $region48
        $region47: #{tpu_custom_call.1} parent=31 // pred_region
          $region49: #{tpu_custom_call.1} parent=47
            #allocation11 [shape = 's32[1]{0}', space=sflag, size = 0x4, scoped, tag = 'scoped memory for tpu_custom_call.1']
            // Predicated region
            $region50: #{tpu_custom_call.1} parent=49 // pred_check
              _
            $region51: #{tpu_custom_call.1} parent=49 // pred_check_branch
              %267 = sbr.rel target = $region53
            $region52: #{tpu_custom_call.1} parent=49 // pred_region
              %268 = sst [smem:[#allocation14]] [#allocation13]
              %269 = sst [smem:[#allocation15]] [#allocation12]
            $region53: #{tpu_custom_call.1} parent=49 // pred_fallthru
              _
            %271 = shalt.err (0)
            %s273 = sshll.u32 %s1, 4
            %s274 = int_to_ptr.hbm [resolvable:$true] %s273
            %s275 = sshll.u32 [#allocation3], 4
            %s276 = int_to_ptr.vmem [resolvable:$true] %s275
            %278 = dma.hbm_to_vmem [thread:$0]  %s274, 4096, %s276, [#allocation11]
            %s279 = smul.u32 4, 64
            %s280 = smul.u32 %s279, 1
            %s281 = sshll.u32 %s280, 4
            %282 = dma.done [#allocation11], %s281
        $region48: #{tpu_custom_call.1} parent=31 // pred_fallthru
          _
        %p283 = scmp.gt.s32.totalorder %s26, 0
        %p284 = pnand %p260, %p283
        %p285 = pneg %p284
        // Predicated region
        $region54: #{tpu_custom_call.1} parent=31 // pred_check
          _
        $region55: #{tpu_custom_call.1} parent=31 // pred_check_branch
          %287 = sbr.rel (%p284) target = $region57
        $region56: #{tpu_custom_call.1} parent=31 // pred_region
          %v288 = vld [vmem:[#allocation2] sm:$0xf]
          %v289 = vld [vmem:[#allocation2 + $0x4] sm:$0xf]
          %v290 = vld [vmem:[#allocation2 + $0x8] sm:$0xf]
          %v291 = vld [vmem:[#allocation2 + $0xc] sm:$0xf]
          %v292 = vld [vmem:[#allocation2 + $0x10] sm:$0xf]
          %v293 = vld [vmem:[#allocation2 + $0x14] sm:$0xf]
          %v294 = vld [vmem:[#allocation2 + $0x18] sm:$0xf]
          %v295 = vld [vmem:[#allocation2 + $0x1c] sm:$0xf]
          %v296 = vld [vmem:[#allocation2 + $0x20] sm:$0xf]
          %v297 = vld [vmem:[#allocation2 + $0x24] sm:$0xf]
          %v298 = vld [vmem:[#allocation2 + $0x28] sm:$0xf]
          %v299 = vld [vmem:[#allocation2 + $0x2c] sm:$0xf]
          %v300 = vld [vmem:[#allocation2 + $0x30] sm:$0xf]
          %v301 = vld [vmem:[#allocation2 + $0x34] sm:$0xf]
          %v302 = vld [vmem:[#allocation2 + $0x38] sm:$0xf]
          %v303 = vld [vmem:[#allocation2 + $0x3c] sm:$0xf]
          %v304 = vld [vmem:[#allocation2 + $0x40] sm:$0xf]
          %v305 = vld [vmem:[#allocation2 + $0x44] sm:$0xf]
          %v306 = vld [vmem:[#allocation2 + $0x48] sm:$0xf]
          %v307 = vld [vmem:[#allocation2 + $0x4c] sm:$0xf]
          %v308 = vld [vmem:[#allocation2 + $0x50] sm:$0xf]
          %v309 = vld [vmem:[#allocation2 + $0x54] sm:$0xf]
          %v310 = vld [vmem:[#allocation2 + $0x58] sm:$0xf]
          %v311 = vld [vmem:[#allocation2 + $0x5c] sm:$0xf]
          %v312 = vld [vmem:[#allocation2 + $0x60] sm:$0xf]
          %v313 = vld [vmem:[#allocation2 + $0x64] sm:$0xf]
          %v314 = vld [vmem:[#allocation2 + $0x68] sm:$0xf]
          %v315 = vld [vmem:[#allocation2 + $0x6c] sm:$0xf]
          %v316 = vld [vmem:[#allocation2 + $0x70] sm:$0xf]
          %v317 = vld [vmem:[#allocation2 + $0x74] sm:$0xf]
          %v318 = vld [vmem:[#allocation2 + $0x78] sm:$0xf]
          %v319 = vld [vmem:[#allocation2 + $0x7c] sm:$0xf]
          %v320 = vld [vmem:[#allocation2 + $0x80] sm:$0xf]
          %v321 = vld [vmem:[#allocation2 + $0x84] sm:$0xf]
          %v322 = vld [vmem:[#allocation2 + $0x88] sm:$0xf]
          %v323 = vld [vmem:[#allocation2 + $0x8c] sm:$0xf]
          %v324 = vld [vmem:[#allocation2 + $0x90] sm:$0xf]
          %v325 = vld [vmem:[#allocation2 + $0x94] sm:$0xf]
          %v326 = vld [vmem:[#allocation2 + $0x98] sm:$0xf]
          %v327 = vld [vmem:[#allocation2 + $0x9c] sm:$0xf]
          %v328 = vld [vmem:[#allocation2 + $0xa0] sm:$0xf]
          %v329 = vld [vmem:[#allocation2 + $0xa4] sm:$0xf]
          %v330 = vld [vmem:[#allocation2 + $0xa8] sm:$0xf]
          %v331 = vld [vmem:[#allocation2 + $0xac] sm:$0xf]
          %v332 = vld [vmem:[#allocation2 + $0xb0] sm:$0xf]
          %v333 = vld [vmem:[#allocation2 + $0xb4] sm:$0xf]
          %v334 = vld [vmem:[#allocation2 + $0xb8] sm:$0xf]
          %v335 = vld [vmem:[#allocation2 + $0xbc] sm:$0xf]
          %v336 = vld [vmem:[#allocation2 + $0xc0] sm:$0xf]
          %v337 = vld [vmem:[#allocation2 + $0xc4] sm:$0xf]
          %v338 = vld [vmem:[#allocation2 + $0xc8] sm:$0xf]
          %v339 = vld [vmem:[#allocation2 + $0xcc] sm:$0xf]
          %v340 = vld [vmem:[#allocation2 + $0xd0] sm:$0xf]
          %v341 = vld [vmem:[#allocation2 + $0xd4] sm:$0xf]
          %v342 = vld [vmem:[#allocation2 + $0xd8] sm:$0xf]
          %v343 = vld [vmem:[#allocation2 + $0xdc] sm:$0xf]
          %v344 = vld [vmem:[#allocation2 + $0xe0] sm:$0xf]
          %v345 = vld [vmem:[#allocation2 + $0xe4] sm:$0xf]
          %v346 = vld [vmem:[#allocation2 + $0xe8] sm:$0xf]
          %v347 = vld [vmem:[#allocation2 + $0xec] sm:$0xf]
          %v348 = vld [vmem:[#allocation2 + $0xf0] sm:$0xf]
          %v349 = vld [vmem:[#allocation2 + $0xf4] sm:$0xf]
          %v350 = vld [vmem:[#allocation2 + $0xf8] sm:$0xf]
          %v351 = vld [vmem:[#allocation2 + $0xfc] sm:$0xf]
          %v352 = vld [vmem:[%s220] sm:$0xf]
          %v353 = vld [vmem:[%s220 + $0x4] sm:$0xf]
          %v354 = vld [vmem:[%s220 + $0x8] sm:$0xf]
          %v355 = vld [vmem:[%s220 + $0xc] sm:$0xf]
          %v356 = vld [vmem:[%s220 + $0x10] sm:$0xf]
          %v357 = vld [vmem:[%s220 + $0x14] sm:$0xf]
          %v358 = vld [vmem:[%s220 + $0x18] sm:$0xf]
          %v359 = vld [vmem:[%s220 + $0x1c] sm:$0xf]
          %v360 = vld [vmem:[%s220 + $0x20] sm:$0xf]
          %v361 = vld [vmem:[%s220 + $0x24] sm:$0xf]
          %v362 = vld [vmem:[%s220 + $0x28] sm:$0xf]
          %v363 = vld [vmem:[%s220 + $0x2c] sm:$0xf]
          %v364 = vld [vmem:[%s220 + $0x30] sm:$0xf]
          %v365 = vld [vmem:[%s220 + $0x34] sm:$0xf]
          %v366 = vld [vmem:[%s220 + $0x38] sm:$0xf]
          %v367 = vld [vmem:[%s220 + $0x3c] sm:$0xf]
          %v432 = vunpack.c.l.b16 %v288
          %v433 = vunpack.c.l.b16 %v289
          %v434 = vunpack.c.l.b16 %v290
          %v435 = vunpack.c.l.b16 %v291
          %v436 = vunpack.c.l.b16 %v292
          %v437 = vunpack.c.l.b16 %v293
          %v438 = vunpack.c.l.b16 %v294
          %v439 = vunpack.c.l.b16 %v295
          %v440 = vunpack.c.l.b16 %v296
          %v441 = vunpack.c.l.b16 %v297
          %v442 = vunpack.c.l.b16 %v298
          %v443 = vunpack.c.l.b16 %v299
          %v444 = vunpack.c.l.b16 %v300
          %v445 = vunpack.c.l.b16 %v301
          %v446 = vunpack.c.l.b16 %v302
          %v447 = vunpack.c.l.b16 %v303
          %v448 = vunpack.c.l.b16 %v304
          %v449 = vunpack.c.l.b16 %v305
          %v450 = vunpack.c.l.b16 %v306
          %v451 = vunpack.c.l.b16 %v307
          %v452 = vunpack.c.l.b16 %v308
          %v453 = vunpack.c.l.b16 %v309
          %v454 = vunpack.c.l.b16 %v310
          %v455 = vunpack.c.l.b16 %v311
          %v456 = vunpack.c.l.b16 %v312
          %v457 = vunpack.c.l.b16 %v313
          %v458 = vunpack.c.l.b16 %v314
          %v459 = vunpack.c.l.b16 %v315
          %v460 = vunpack.c.l.b16 %v316
          %v461 = vunpack.c.l.b16 %v317
          %v462 = vunpack.c.l.b16 %v318
          %v463 = vunpack.c.l.b16 %v319
          %v464 = vunpack.c.l.b16 %v320
          %v465 = vunpack.c.l.b16 %v321
          %v466 = vunpack.c.l.b16 %v322
          %v467 = vunpack.c.l.b16 %v323
          %v468 = vunpack.c.l.b16 %v324
          %v469 = vunpack.c.l.b16 %v325
          %v470 = vunpack.c.l.b16 %v326
          %v471 = vunpack.c.l.b16 %v327
          %v472 = vunpack.c.l.b16 %v328
          %v473 = vunpack.c.l.b16 %v329
          %v474 = vunpack.c.l.b16 %v330
          %v475 = vunpack.c.l.b16 %v331
          %v476 = vunpack.c.l.b16 %v332
          %v477 = vunpack.c.l.b16 %v333
          %v478 = vunpack.c.l.b16 %v334
          %v479 = vunpack.c.l.b16 %v335
          %v480 = vunpack.c.l.b16 %v336
          %v481 = vunpack.c.l.b16 %v337
          %v482 = vunpack.c.l.b16 %v338
          %v483 = vunpack.c.l.b16 %v339
          %v484 = vunpack.c.l.b16 %v340
          %v485 = vunpack.c.l.b16 %v341
          %v486 = vunpack.c.l.b16 %v342
          %v487 = vunpack.c.l.b16 %v343
          %v488 = vunpack.c.l.b16 %v344
          %v489 = vunpack.c.l.b16 %v345
          %v490 = vunpack.c.l.b16 %v346
          %v491 = vunpack.c.l.b16 %v347
          %v492 = vunpack.c.l.b16 %v348
          %v493 = vunpack.c.l.b16 %v349
          %v494 = vunpack.c.l.b16 %v350
          %v495 = vunpack.c.l.b16 %v351
          %v496 = vpack.c.b16 %v433, %v432
          %v497 = vpack.c.b16 %v435, %v434
          %v498 = vpack.c.b16 %v437, %v436
          %v499 = vpack.c.b16 %v439, %v438
          %v500 = vpack.c.b16 %v441, %v440
          %v501 = vpack.c.b16 %v443, %v442
          %v502 = vpack.c.b16 %v445, %v444
          %v503 = vpack.c.b16 %v447, %v446
          %v504 = vpack.c.b16 %v449, %v448
          %v505 = vpack.c.b16 %v451, %v450
          %v506 = vpack.c.b16 %v453, %v452
          %v507 = vpack.c.b16 %v455, %v454
          %v508 = vpack.c.b16 %v457, %v456
          %v509 = vpack.c.b16 %v459, %v458
          %v510 = vpack.c.b16 %v461, %v460
          %v511 = vpack.c.b16 %v463, %v462
          %v512 = vpack.c.b16 %v465, %v464
          %v513 = vpack.c.b16 %v467, %v466
          %v514 = vpack.c.b16 %v469, %v468
          %v515 = vpack.c.b16 %v471, %v470
          %v516 = vpack.c.b16 %v473, %v472
          %v517 = vpack.c.b16 %v475, %v474
          %v518 = vpack.c.b16 %v477, %v476
          %v519 = vpack.c.b16 %v479, %v478
          %v520 = vpack.c.b16 %v481, %v480
          %v521 = vpack.c.b16 %v483, %v482
          %v522 = vpack.c.b16 %v485, %v484
          %v523 = vpack.c.b16 %v487, %v486
          %v524 = vpack.c.b16 %v489, %v488
          %v525 = vpack.c.b16 %v491, %v490
          %v526 = vpack.c.b16 %v493, %v492
          %v527 = vpack.c.b16 %v495, %v494
          %v576 = vunpack.c.l.b16 %v352
          %v577 = vunpack.c.l.b16 %v353
          %v578 = vunpack.c.l.b16 %v354
          %v579 = vunpack.c.l.b16 %v355
          %v580 = vunpack.c.l.b16 %v356
          %v581 = vunpack.c.l.b16 %v357
          %v582 = vunpack.c.l.b16 %v358
          %v583 = vunpack.c.l.b16 %v359
          %v584 = vunpack.c.l.b16 %v360
          %v585 = vunpack.c.l.b16 %v361
          %v586 = vunpack.c.l.b16 %v362
          %v587 = vunpack.c.l.b16 %v363
          %v588 = vunpack.c.l.b16 %v364
          %v589 = vunpack.c.l.b16 %v365
          %v590 = vunpack.c.l.b16 %v366
          %v591 = vunpack.c.l.b16 %v367
          %v592 = vpack.c.b16 %v577, %v576
          %v593 = vpack.c.b16 %v579, %v578
          %v594 = vpack.c.b16 %v581, %v580
          %v595 = vpack.c.b16 %v583, %v582
          %v596 = vpack.c.b16 %v585, %v584
          %v597 = vpack.c.b16 %v587, %v586
          %v598 = vpack.c.b16 %v589, %v588
          %v599 = vpack.c.b16 %v591, %v590
          %608 = vmatpush.bf16.msra.mxu0 %v599
          %609 = vmatpush.bf16.msra.mxu0 %v598
          %610 = vmatpush.bf16.msra.mxu0 %v597
          %611 = vmatpush.bf16.msra.mxu0 %v596
          %612 = vmatpush.bf16.msra.mxu0 %v595
          %613 = vmatpush.bf16.msra.mxu0 %v594
          %614 = vmatpush.bf16.msra.mxu0 %v593
          %615 = vmatpush.bf16.msra.mxu0 %v592
          %616 = vmatmul.bf16.gmra.mxu0 %v496
          %v617 = vpop.f32.mrf.mxu0
          %v618 = vadd.f32 0.0, %v617
          %v619 = vpop.f32.mrf.mxu0
          %v620 = vadd.f32 0.0, %v619
          %621 = vmatmul.bf16.gmra.mxu0 %v497
          %v622 = vpop.f32.mrf.mxu0
          %v623 = vadd.f32 0.0, %v622
          %v624 = vpop.f32.mrf.mxu0
          %v625 = vadd.f32 0.0, %v624
          %626 = vmatmul.bf16.gmra.mxu0 %v498
          %v627 = vpop.f32.mrf.mxu0
          %v628 = vadd.f32 0.0, %v627
          %v629 = vpop.f32.mrf.mxu0
          %v630 = vadd.f32 0.0, %v629
          %631 = vmatmul.bf16.gmra.mxu0 %v499
          %v632 = vpop.f32.mrf.mxu0
          %v633 = vadd.f32 0.0, %v632
          %v634 = vpop.f32.mrf.mxu0
          %v635 = vadd.f32 0.0, %v634
          %636 = vmatmul.bf16.gmra.mxu0 %v500
          %v637 = vpop.f32.mrf.mxu0
          %v638 = vadd.f32 0.0, %v637
          %v639 = vpop.f32.mrf.mxu0
          %v640 = vadd.f32 0.0, %v639
          %641 = vmatmul.bf16.gmra.mxu0 %v501
          %v642 = vpop.f32.mrf.mxu0
          %v643 = vadd.f32 0.0, %v642
          %v644 = vpop.f32.mrf.mxu0
          %v645 = vadd.f32 0.0, %v644
          %646 = vmatmul.bf16.gmra.mxu0 %v502
          %v647 = vpop.f32.mrf.mxu0
          %v648 = vadd.f32 0.0, %v647
          %v649 = vpop.f32.mrf.mxu0
          %v650 = vadd.f32 0.0, %v649
          %651 = vmatmul.bf16.gmra.mxu0 %v503
          %v652 = vpop.f32.mrf.mxu0
          %v653 = vadd.f32 0.0, %v652
          %v654 = vpop.f32.mrf.mxu0
          %v655 = vadd.f32 0.0, %v654
          %656 = vmatmul.bf16.gmra.mxu0 %v504
          %v657 = vpop.f32.mrf.mxu0
          %v658 = vadd.f32 0.0, %v657
          %v659 = vpop.f32.mrf.mxu0
          %v660 = vadd.f32 0.0, %v659
          %661 = vmatmul.bf16.gmra.mxu0 %v505
          %v662 = vpop.f32.mrf.mxu0
          %v663 = vadd.f32 0.0, %v662
          %v664 = vpop.f32.mrf.mxu0
          %v665 = vadd.f32 0.0, %v664
          %666 = vmatmul.bf16.gmra.mxu0 %v506
          %v667 = vpop.f32.mrf.mxu0
          %v668 = vadd.f32 0.0, %v667
          %v669 = vpop.f32.mrf.mxu0
          %v670 = vadd.f32 0.0, %v669
          %671 = vmatmul.bf16.gmra.mxu0 %v507
          %v672 = vpop.f32.mrf.mxu0
          %v673 = vadd.f32 0.0, %v672
          %v674 = vpop.f32.mrf.mxu0
          %v675 = vadd.f32 0.0, %v674
          %676 = vmatmul.bf16.gmra.mxu0 %v508
          %v677 = vpop.f32.mrf.mxu0
          %v678 = vadd.f32 0.0, %v677
          %v679 = vpop.f32.mrf.mxu0
          %v680 = vadd.f32 0.0, %v679
          %681 = vmatmul.bf16.gmra.mxu0 %v509
          %v682 = vpop.f32.mrf.mxu0
          %v683 = vadd.f32 0.0, %v682
          %v684 = vpop.f32.mrf.mxu0
          %v685 = vadd.f32 0.0, %v684
          %686 = vmatmul.bf16.gmra.mxu0 %v510
          %v687 = vpop.f32.mrf.mxu0
          %v688 = vadd.f32 0.0, %v687
          %v689 = vpop.f32.mrf.mxu0
          %v690 = vadd.f32 0.0, %v689
          %691 = vmatmul.bf16.gmra.mxu0 %v511
          %v692 = vpop.f32.mrf.mxu0
          %v693 = vadd.f32 0.0, %v692
          %v694 = vpop.f32.mrf.mxu0
          %v695 = vadd.f32 0.0, %v694
          %696 = vmatmul.bf16.gmra.mxu0 %v512
          %v697 = vpop.f32.mrf.mxu0
          %v698 = vadd.f32 0.0, %v697
          %v699 = vpop.f32.mrf.mxu0
          %v700 = vadd.f32 0.0, %v699
          %701 = vmatmul.bf16.gmra.mxu0 %v513
          %v702 = vpop.f32.mrf.mxu0
          %v703 = vadd.f32 0.0, %v702
          %v704 = vpop.f32.mrf.mxu0
          %v705 = vadd.f32 0.0, %v704
          %706 = vmatmul.bf16.gmra.mxu0 %v514
          %v707 = vpop.f32.mrf.mxu0
          %v708 = vadd.f32 0.0, %v707
          %v709 = vpop.f32.mrf.mxu0
          %v710 = vadd.f32 0.0, %v709
          %711 = vmatmul.bf16.gmra.mxu0 %v515
          %v712 = vpop.f32.mrf.mxu0
          %v713 = vadd.f32 0.0, %v712
          %v714 = vpop.f32.mrf.mxu0
          %v715 = vadd.f32 0.0, %v714
          %716 = vmatmul.bf16.gmra.mxu0 %v516
          %v717 = vpop.f32.mrf.mxu0
          %v718 = vadd.f32 0.0, %v717
          %v719 = vpop.f32.mrf.mxu0
          %v720 = vadd.f32 0.0, %v719
          %721 = vmatmul.bf16.gmra.mxu0 %v517
          %v722 = vpop.f32.mrf.mxu0
          %v723 = vadd.f32 0.0, %v722
          %v724 = vpop.f32.mrf.mxu0
          %v725 = vadd.f32 0.0, %v724
          %726 = vmatmul.bf16.gmra.mxu0 %v518
          %v727 = vpop.f32.mrf.mxu0
          %v728 = vadd.f32 0.0, %v727
          %v729 = vpop.f32.mrf.mxu0
          %v730 = vadd.f32 0.0, %v729
          %731 = vmatmul.bf16.gmra.mxu0 %v519
          %v732 = vpop.f32.mrf.mxu0
          %v733 = vadd.f32 0.0, %v732
          %v734 = vpop.f32.mrf.mxu0
          %v735 = vadd.f32 0.0, %v734
          %736 = vmatmul.bf16.gmra.mxu0 %v520
          %v737 = vpop.f32.mrf.mxu0
          %v738 = vadd.f32 0.0, %v737
          %v739 = vpop.f32.mrf.mxu0
          %v740 = vadd.f32 0.0, %v739
          %741 = vmatmul.bf16.gmra.mxu0 %v521
          %v742 = vpop.f32.mrf.mxu0
          %v743 = vadd.f32 0.0, %v742
          %v744 = vpop.f32.mrf.mxu0
          %v745 = vadd.f32 0.0, %v744
          %746 = vmatmul.bf16.gmra.mxu0 %v522
          %v747 = vpop.f32.mrf.mxu0
          %v748 = vadd.f32 0.0, %v747
          %v749 = vpop.f32.mrf.mxu0
          %v750 = vadd.f32 0.0, %v749
          %751 = vmatmul.bf16.gmra.mxu0 %v523
          %v752 = vpop.f32.mrf.mxu0
          %v753 = vadd.f32 0.0, %v752
          %v754 = vpop.f32.mrf.mxu0
          %v755 = vadd.f32 0.0, %v754
          %756 = vmatmul.bf16.gmra.mxu0 %v524
          %v757 = vpop.f32.mrf.mxu0
          %v758 = vadd.f32 0.0, %v757
          %v759 = vpop.f32.mrf.mxu0
          %v760 = vadd.f32 0.0, %v759
          %761 = vmatmul.bf16.gmra.mxu0 %v525
          %v762 = vpop.f32.mrf.mxu0
          %v763 = vadd.f32 0.0, %v762
          %v764 = vpop.f32.mrf.mxu0
          %v765 = vadd.f32 0.0, %v764
          %766 = vmatmul.bf16.gmra.mxu0 %v526
          %v767 = vpop.f32.mrf.mxu0
          %v768 = vadd.f32 0.0, %v767
          %v769 = vpop.f32.mrf.mxu0
          %v770 = vadd.f32 0.0, %v769
          %771 = vmatmul.bf16.gmra.mxu0 %v527
          %v772 = vpop.f32.mrf.mxu0
          %v773 = vadd.f32 0.0, %v772
          %v774 = vpop.f32.mrf.mxu0
          %v775 = vadd.f32 0.0, %v774
          %776 = vdwg.mxu0
          %v777 = vpack.c.bf16 %v618, %v618
          %v778 = vpack.c.bf16 %v620, %v620
          %v779 = vpack.c.bf16 %v623, %v623
          %v780 = vpack.c.bf16 %v625, %v625
          %v781 = vpack.c.bf16 %v628, %v628
          %v782 = vpack.c.bf16 %v630, %v630
          %v783 = vpack.c.bf16 %v633, %v633
          %v784 = vpack.c.bf16 %v635, %v635
          %v785 = vpack.c.bf16 %v638, %v638
          %v786 = vpack.c.bf16 %v640, %v640
          %v787 = vpack.c.bf16 %v643, %v643
          %v788 = vpack.c.bf16 %v645, %v645
          %v789 = vpack.c.bf16 %v648, %v648
          %v790 = vpack.c.bf16 %v650, %v650
          %v791 = vpack.c.bf16 %v653, %v653
          %v792 = vpack.c.bf16 %v655, %v655
          %v793 = vpack.c.bf16 %v658, %v658
          %v794 = vpack.c.bf16 %v660, %v660
          %v795 = vpack.c.bf16 %v663, %v663
          %v796 = vpack.c.bf16 %v665, %v665
          %v797 = vpack.c.bf16 %v668, %v668
          %v798 = vpack.c.bf16 %v670, %v670
          %v799 = vpack.c.bf16 %v673, %v673
          %v800 = vpack.c.bf16 %v675, %v675
          %v801 = vpack.c.bf16 %v678, %v678
          %v802 = vpack.c.bf16 %v680, %v680
          %v803 = vpack.c.bf16 %v683, %v683
          %v804 = vpack.c.bf16 %v685, %v685
          %v805 = vpack.c.bf16 %v688, %v688
          %v806 = vpack.c.bf16 %v690, %v690
          %v807 = vpack.c.bf16 %v693, %v693
          %v808 = vpack.c.bf16 %v695, %v695
          %v809 = vpack.c.bf16 %v698, %v698
          %v810 = vpack.c.bf16 %v700, %v700
          %v811 = vpack.c.bf16 %v703, %v703
          %v812 = vpack.c.bf16 %v705, %v705
          %v813 = vpack.c.bf16 %v708, %v708
          %v814 = vpack.c.bf16 %v710, %v710
          %v815 = vpack.c.bf16 %v713, %v713
          %v816 = vpack.c.bf16 %v715, %v715
          %v817 = vpack.c.bf16 %v718, %v718
          %v818 = vpack.c.bf16 %v720, %v720
          %v819 = vpack.c.bf16 %v723, %v723
          %v820 = vpack.c.bf16 %v725, %v725
          %v821 = vpack.c.bf16 %v728, %v728
          %v822 = vpack.c.bf16 %v730, %v730
          %v823 = vpack.c.bf16 %v733, %v733
          %v824 = vpack.c.bf16 %v735, %v735
          %v825 = vpack.c.bf16 %v738, %v738
          %v826 = vpack.c.bf16 %v740, %v740
          %v827 = vpack.c.bf16 %v743, %v743
          %v828 = vpack.c.bf16 %v745, %v745
          %v829 = vpack.c.bf16 %v748, %v748
          %v830 = vpack.c.bf16 %v750, %v750
          %v831 = vpack.c.bf16 %v753, %v753
          %v832 = vpack.c.bf16 %v755, %v755
          %v833 = vpack.c.bf16 %v758, %v758
          %v834 = vpack.c.bf16 %v760, %v760
          %v835 = vpack.c.bf16 %v763, %v763
          %v836 = vpack.c.bf16 %v765, %v765
          %v837 = vpack.c.bf16 %v768, %v768
          %v838 = vpack.c.bf16 %v770, %v770
          %v839 = vpack.c.bf16 %v773, %v773
          %v840 = vpack.c.bf16 %v775, %v775
          %841 = vst [vmem:[#allocation3] sm:$0xf] %v777
          %842 = vst [vmem:[#allocation3 + $0x4] sm:$0xf] %v778
          %843 = vst [vmem:[#allocation3 + $0x8] sm:$0xf] %v779
          %844 = vst [vmem:[#allocation3 + $0xc] sm:$0xf] %v780
          %845 = vst [vmem:[#allocation3 + $0x10] sm:$0xf] %v781
          %846 = vst [vmem:[#allocation3 + $0x14] sm:$0xf] %v782
          %847 = vst [vmem:[#allocation3 + $0x18] sm:$0xf] %v783
          %848 = vst [vmem:[#allocation3 + $0x1c] sm:$0xf] %v784
          %849 = vst [vmem:[#allocation3 + $0x20] sm:$0xf] %v785
          %850 = vst [vmem:[#allocation3 + $0x24] sm:$0xf] %v786
          %851 = vst [vmem:[#allocation3 + $0x28] sm:$0xf] %v787
          %852 = vst [vmem:[#allocation3 + $0x2c] sm:$0xf] %v788
          %853 = vst [vmem:[#allocation3 + $0x30] sm:$0xf] %v789
          %854 = vst [vmem:[#allocation3 + $0x34] sm:$0xf] %v790
          %855 = vst [vmem:[#allocation3 + $0x38] sm:$0xf] %v791
          %856 = vst [vmem:[#allocation3 + $0x3c] sm:$0xf] %v792
          %857 = vst [vmem:[#allocation3 + $0x40] sm:$0xf] %v793
          %858 = vst [vmem:[#allocation3 + $0x44] sm:$0xf] %v794
          %859 = vst [vmem:[#allocation3 + $0x48] sm:$0xf] %v795
          %860 = vst [vmem:[#allocation3 + $0x4c] sm:$0xf] %v796
          %861 = vst [vmem:[#allocation3 + $0x50] sm:$0xf] %v797
          %862 = vst [vmem:[#allocation3 + $0x54] sm:$0xf] %v798
          %863 = vst [vmem:[#allocation3 + $0x58] sm:$0xf] %v799
          %864 = vst [vmem:[#allocation3 + $0x5c] sm:$0xf] %v800
          %865 = vst [vmem:[#allocation3 + $0x60] sm:$0xf] %v801
          %866 = vst [vmem:[#allocation3 + $0x64] sm:$0xf] %v802
          %867 = vst [vmem:[#allocation3 + $0x68] sm:$0xf] %v803
          %868 = vst [vmem:[#allocation3 + $0x6c] sm:$0xf] %v804
          %869 = vst [vmem:[#allocation3 + $0x70] sm:$0xf] %v805
          %870 = vst [vmem:[#allocation3 + $0x74] sm:$0xf] %v806
          %871 = vst [vmem:[#allocation3 + $0x78] sm:$0xf] %v807
          %872 = vst [vmem:[#allocation3 + $0x7c] sm:$0xf] %v808
          %873 = vst [vmem:[#allocation3 + $0x80] sm:$0xf] %v809
          %874 = vst [vmem:[#allocation3 + $0x84] sm:$0xf] %v810
          %875 = vst [vmem:[#allocation3 + $0x88] sm:$0xf] %v811
          %876 = vst [vmem:[#allocation3 + $0x8c] sm:$0xf] %v812
          %877 = vst [vmem:[#allocation3 + $0x90] sm:$0xf] %v813
          %878 = vst [vmem:[#allocation3 + $0x94] sm:$0xf] %v814
          %879 = vst [vmem:[#allocation3 + $0x98] sm:$0xf] %v815
          %880 = vst [vmem:[#allocation3 + $0x9c] sm:$0xf] %v816
          %881 = vst [vmem:[#allocation3 + $0xa0] sm:$0xf] %v817
          %882 = vst [vmem:[#allocation3 + $0xa4] sm:$0xf] %v818
          %883 = vst [vmem:[#allocation3 + $0xa8] sm:$0xf] %v819
          %884 = vst [vmem:[#allocation3 + $0xac] sm:$0xf] %v820
          %885 = vst [vmem:[#allocation3 + $0xb0] sm:$0xf] %v821
          %886 = vst [vmem:[#allocation3 + $0xb4] sm:$0xf] %v822
          %887 = vst [vmem:[#allocation3 + $0xb8] sm:$0xf] %v823
          %888 = vst [vmem:[#allocation3 + $0xbc] sm:$0xf] %v824
          %889 = vst [vmem:[#allocation3 + $0xc0] sm:$0xf] %v825
          %890 = vst [vmem:[#allocation3 + $0xc4] sm:$0xf] %v826
          %891 = vst [vmem:[#allocation3 + $0xc8] sm:$0xf] %v827
          %892 = vst [vmem:[#allocation3 + $0xcc] sm:$0xf] %v828
          %893 = vst [vmem:[#allocation3 + $0xd0] sm:$0xf] %v829
          %894 = vst [vmem:[#allocation3 + $0xd4] sm:$0xf] %v830
          %895 = vst [vmem:[#allocation3 + $0xd8] sm:$0xf] %v831
          %896 = vst [vmem:[#allocation3 + $0xdc] sm:$0xf] %v832
          %897 = vst [vmem:[#allocation3 + $0xe0] sm:$0xf] %v833
          %898 = vst [vmem:[#allocation3 + $0xe4] sm:$0xf] %v834
          %899 = vst [vmem:[#allocation3 + $0xe8] sm:$0xf] %v835
          %900 = vst [vmem:[#allocation3 + $0xec] sm:$0xf] %v836
          %901 = vst [vmem:[#allocation3 + $0xf0] sm:$0xf] %v837
          %902 = vst [vmem:[#allocation3 + $0xf4] sm:$0xf] %v838
          %903 = vst [vmem:[#allocation3 + $0xf8] sm:$0xf] %v839
          %904 = vst [vmem:[#allocation3 + $0xfc] sm:$0xf] %v840
        $region57: #{tpu_custom_call.1} parent=31 // pred_fallthru
          _
        %s905 = smul.u32 %s27, 256
        %s906 = sshra.s32 %s905, 3
        %s907 = sand.u32 %s905, 7
        %s908 = smul.u32 %s906, 4
        %s909 = smul.addr %s908, 4
        %s910 = scalar_lea.vmem [#allocation4], %s909
        %v911 = vld [vmem:[%s910] sm:$0xff]
        %v912 = vld [vmem:[%s910 + $0x8] sm:$0xff]
        %v913 = vld [vmem:[%s910 + $0x10] sm:$0xff]
        %v914 = vld [vmem:[%s910 + $0x18] sm:$0xff]
        %v915 = vld [vmem:[%s910 + $0x20] sm:$0xff]
        %v916 = vld [vmem:[%s910 + $0x28] sm:$0xff]
        %v917 = vld [vmem:[%s910 + $0x30] sm:$0xff]
        %v918 = vld [vmem:[%s910 + $0x38] sm:$0xff]
        %v919 = vld [vmem:[%s910 + $0x40] sm:$0xff]
        %v920 = vld [vmem:[%s910 + $0x48] sm:$0xff]
        %v921 = vld [vmem:[%s910 + $0x50] sm:$0xff]
        %v922 = vld [vmem:[%s910 + $0x58] sm:$0xff]
        %v923 = vld [vmem:[%s910 + $0x60] sm:$0xff]
        %v924 = vld [vmem:[%s910 + $0x68] sm:$0xff]
        %v925 = vld [vmem:[%s910 + $0x70] sm:$0xff]
        %v926 = vld [vmem:[%s910 + $0x78] sm:$0xff]
        %v927 = vld [vmem:[%s910 + $0x80] sm:$0xff]
        %v928 = vld [vmem:[%s910 + $0x88] sm:$0xff]
        %v929 = vld [vmem:[%s910 + $0x90] sm:$0xff]
        %v930 = vld [vmem:[%s910 + $0x98] sm:$0xff]
        %v931 = vld [vmem:[%s910 + $0xa0] sm:$0xff]
        %v932 = vld [vmem:[%s910 + $0xa8] sm:$0xff]
        %v933 = vld [vmem:[%s910 + $0xb0] sm:$0xff]
        %v934 = vld [vmem:[%s910 + $0xb8] sm:$0xff]
        %v935 = vld [vmem:[%s910 + $0xc0] sm:$0xff]
        %v936 = vld [vmem:[%s910 + $0xc8] sm:$0xff]
        %v937 = vld [vmem:[%s910 + $0xd0] sm:$0xff]
        %v938 = vld [vmem:[%s910 + $0xd8] sm:$0xff]
        %v939 = vld [vmem:[%s910 + $0xe0] sm:$0xff]
        %v940 = vld [vmem:[%s910 + $0xe8] sm:$0xff]
        %v941 = vld [vmem:[%s910 + $0xf0] sm:$0xff]
        %v942 = vld [vmem:[%s910 + $0xf8] sm:$0xff]
        %v943 = vld [vmem:[%s910 + $0x100] sm:$0xff]
        %v944 = vld [vmem:[%s910 + $0x108] sm:$0xff]
        %v945 = vld [vmem:[%s910 + $0x110] sm:$0xff]
        %v946 = vld [vmem:[%s910 + $0x118] sm:$0xff]
        %v947 = vld [vmem:[%s910 + $0x120] sm:$0xff]
        %v948 = vld [vmem:[%s910 + $0x128] sm:$0xff]
        %v949 = vld [vmem:[%s910 + $0x130] sm:$0xff]
        %v950 = vld [vmem:[%s910 + $0x138] sm:$0xff]
        %v951 = vld [vmem:[%s910 + $0x140] sm:$0xff]
        %v952 = vld [vmem:[%s910 + $0x148] sm:$0xff]
        %v953 = vld [vmem:[%s910 + $0x150] sm:$0xff]
        %v954 = vld [vmem:[%s910 + $0x158] sm:$0xff]
        %v955 = vld [vmem:[%s910 + $0x160] sm:$0xff]
        %v956 = vld [vmem:[%s910 + $0x168] sm:$0xff]
        %v957 = vld [vmem:[%s910 + $0x170] sm:$0xff]
        %v958 = vld [vmem:[%s910 + $0x178] sm:$0xff]
        %v959 = vld [vmem:[%s910 + $0x180] sm:$0xff]
        %v960 = vld [vmem:[%s910 + $0x188] sm:$0xff]
        %v961 = vld [vmem:[%s910 + $0x190] sm:$0xff]
        %v962 = vld [vmem:[%s910 + $0x198] sm:$0xff]
        %v963 = vld [vmem:[%s910 + $0x1a0] sm:$0xff]
        %v964 = vld [vmem:[%s910 + $0x1a8] sm:$0xff]
        %v965 = vld [vmem:[%s910 + $0x1b0] sm:$0xff]
        %v966 = vld [vmem:[%s910 + $0x1b8] sm:$0xff]
        %v967 = vld [vmem:[%s910 + $0x1c0] sm:$0xff]
        %v968 = vld [vmem:[%s910 + $0x1c8] sm:$0xff]
        %v969 = vld [vmem:[%s910 + $0x1d0] sm:$0xff]
        %v970 = vld [vmem:[%s910 + $0x1d8] sm:$0xff]
        %v971 = vld [vmem:[%s910 + $0x1e0] sm:$0xff]
        %v972 = vld [vmem:[%s910 + $0x1e8] sm:$0xff]
        %v973 = vld [vmem:[%s910 + $0x1f0] sm:$0xff]
        %v974 = vld [vmem:[%s910 + $0x1f8] sm:$0xff]
        %v975 = vld [vmem:[#allocation3] sm:$0xf]
        %v976 = vld [vmem:[#allocation3 + $0x4] sm:$0xf]
        %v977 = vld [vmem:[#allocation3 + $0x8] sm:$0xf]
        %v978 = vld [vmem:[#allocation3 + $0xc] sm:$0xf]
        %v979 = vld [vmem:[#allocation3 + $0x10] sm:$0xf]
        %v980 = vld [vmem:[#allocation3 + $0x14] sm:$0xf]
        %v981 = vld [vmem:[#allocation3 + $0x18] sm:$0xf]
        %v982 = vld [vmem:[#allocation3 + $0x1c] sm:$0xf]
        %v983 = vld [vmem:[#allocation3 + $0x20] sm:$0xf]
        %v984 = vld [vmem:[#allocation3 + $0x24] sm:$0xf]
        %v985 = vld [vmem:[#allocation3 + $0x28] sm:$0xf]
        %v986 = vld [vmem:[#allocation3 + $0x2c] sm:$0xf]
        %v987 = vld [vmem:[#allocation3 + $0x30] sm:$0xf]
        %v988 = vld [vmem:[#allocation3 + $0x34] sm:$0xf]
        %v989 = vld [vmem:[#allocation3 + $0x38] sm:$0xf]
        %v990 = vld [vmem:[#allocation3 + $0x3c] sm:$0xf]
        %v991 = vld [vmem:[#allocation3 + $0x40] sm:$0xf]
        %v992 = vld [vmem:[#allocation3 + $0x44] sm:$0xf]
        %v993 = vld [vmem:[#allocation3 + $0x48] sm:$0xf]
        %v994 = vld [vmem:[#allocation3 + $0x4c] sm:$0xf]
        %v995 = vld [vmem:[#allocation3 + $0x50] sm:$0xf]
        %v996 = vld [vmem:[#allocation3 + $0x54] sm:$0xf]
        %v997 = vld [vmem:[#allocation3 + $0x58] sm:$0xf]
        %v998 = vld [vmem:[#allocation3 + $0x5c] sm:$0xf]
        %v999 = vld [vmem:[#allocation3 + $0x60] sm:$0xf]
        %v1000 = vld [vmem:[#allocation3 + $0x64] sm:$0xf]
        %v1001 = vld [vmem:[#allocation3 + $0x68] sm:$0xf]
        %v1002 = vld [vmem:[#allocation3 + $0x6c] sm:$0xf]
        %v1003 = vld [vmem:[#allocation3 + $0x70] sm:$0xf]
        %v1004 = vld [vmem:[#allocation3 + $0x74] sm:$0xf]
        %v1005 = vld [vmem:[#allocation3 + $0x78] sm:$0xf]
        %v1006 = vld [vmem:[#allocation3 + $0x7c] sm:$0xf]
        %v1007 = vld [vmem:[#allocation3 + $0x80] sm:$0xf]
        %v1008 = vld [vmem:[#allocation3 + $0x84] sm:$0xf]
        %v1009 = vld [vmem:[#allocation3 + $0x88] sm:$0xf]
        %v1010 = vld [vmem:[#allocation3 + $0x8c] sm:$0xf]
        %v1011 = vld [vmem:[#allocation3 + $0x90] sm:$0xf]
        %v1012 = vld [vmem:[#allocation3 + $0x94] sm:$0xf]
        %v1013 = vld [vmem:[#allocation3 + $0x98] sm:$0xf]
        %v1014 = vld [vmem:[#allocation3 + $0x9c] sm:$0xf]
        %v1015 = vld [vmem:[#allocation3 + $0xa0] sm:$0xf]
        %v1016 = vld [vmem:[#allocation3 + $0xa4] sm:$0xf]
        %v1017 = vld [vmem:[#allocation3 + $0xa8] sm:$0xf]
        %v1018 = vld [vmem:[#allocation3 + $0xac] sm:$0xf]
        %v1019 = vld [vmem:[#allocation3 + $0xb0] sm:$0xf]
        %v1020 = vld [vmem:[#allocation3 + $0xb4] sm:$0xf]
        %v1021 = vld [vmem:[#allocation3 + $0xb8] sm:$0xf]
        %v1022 = vld [vmem:[#allocation3 + $0xbc] sm:$0xf]
        %v1023 = vld [vmem:[#allocation3 + $0xc0] sm:$0xf]
        %v1024 = vld [vmem:[#allocation3 + $0xc4] sm:$0xf]
        %v1025 = vld [vmem:[#allocation3 + $0xc8] sm:$0xf]
        %v1026 = vld [vmem:[#allocation3 + $0xcc] sm:$0xf]
        %v1027 = vld [vmem:[#allocation3 + $0xd0] sm:$0xf]
        %v1028 = vld [vmem:[#allocation3 + $0xd4] sm:$0xf]
        %v1029 = vld [vmem:[#allocation3 + $0xd8] sm:$0xf]
        %v1030 = vld [vmem:[#allocation3 + $0xdc] sm:$0xf]
        %v1031 = vld [vmem:[#allocation3 + $0xe0] sm:$0xf]
        %v1032 = vld [vmem:[#allocation3 + $0xe4] sm:$0xf]
        %v1033 = vld [vmem:[#allocation3 + $0xe8] sm:$0xf]
        %v1034 = vld [vmem:[#allocation3 + $0xec] sm:$0xf]
        %v1035 = vld [vmem:[#allocation3 + $0xf0] sm:$0xf]
        %v1036 = vld [vmem:[#allocation3 + $0xf4] sm:$0xf]
        %v1037 = vld [vmem:[#allocation3 + $0xf8] sm:$0xf]
        %v1038 = vld [vmem:[#allocation3 + $0xfc] sm:$0xf]
        %v1039 = vld [vmem:[%s229] sm:$0x1]
        %v1041 = vperm.slane %v1039, 0
        %v1107 = vunpack.c.l.b16 %v911
        %v1108 = vunpack.c.h.b16 %v911
        %v1109 = vunpack.c.l.b16 %v912
        %v1110 = vunpack.c.h.b16 %v912
        %v1111 = vunpack.c.l.b16 %v913
        %v1112 = vunpack.c.h.b16 %v913
        %v1113 = vunpack.c.l.b16 %v914
        %v1114 = vunpack.c.h.b16 %v914
        %v1115 = vunpack.c.l.b16 %v915
        %v1116 = vunpack.c.h.b16 %v915
        %v1117 = vunpack.c.l.b16 %v916
        %v1118 = vunpack.c.h.b16 %v916
        %v1119 = vunpack.c.l.b16 %v917
        %v1120 = vunpack.c.h.b16 %v917
        %v1121 = vunpack.c.l.b16 %v918
        %v1122 = vunpack.c.h.b16 %v918
        %v1123 = vunpack.c.l.b16 %v919
        %v1124 = vunpack.c.h.b16 %v919
        %v1125 = vunpack.c.l.b16 %v920
        %v1126 = vunpack.c.h.b16 %v920
        %v1127 = vunpack.c.l.b16 %v921
        %v1128 = vunpack.c.h.b16 %v921
        %v1129 = vunpack.c.l.b16 %v922
        %v1130 = vunpack.c.h.b16 %v922
        %v1131 = vunpack.c.l.b16 %v923
        %v1132 = vunpack.c.h.b16 %v923
        %v1133 = vunpack.c.l.b16 %v924
        %v1134 = vunpack.c.h.b16 %v924
        %v1135 = vunpack.c.l.b16 %v925
        %v1136 = vunpack.c.h.b16 %v925
        %v1137 = vunpack.c.l.b16 %v926
        %v1138 = vunpack.c.h.b16 %v926
        %v1139 = vunpack.c.l.b16 %v927
        %v1140 = vunpack.c.h.b16 %v927
        %v1141 = vunpack.c.l.b16 %v928
        %v1142 = vunpack.c.h.b16 %v928
        %v1143 = vunpack.c.l.b16 %v929
        %v1144 = vunpack.c.h.b16 %v929
        %v1145 = vunpack.c.l.b16 %v930
        %v1146 = vunpack.c.h.b16 %v930
        %v1147 = vunpack.c.l.b16 %v931
        %v1148 = vunpack.c.h.b16 %v931
        %v1149 = vunpack.c.l.b16 %v932
        %v1150 = vunpack.c.h.b16 %v932
        %v1151 = vunpack.c.l.b16 %v933
        %v1152 = vunpack.c.h.b16 %v933
        %v1153 = vunpack.c.l.b16 %v934
        %v1154 = vunpack.c.h.b16 %v934
        %v1155 = vunpack.c.l.b16 %v935
        %v1156 = vunpack.c.h.b16 %v935
        %v1157 = vunpack.c.l.b16 %v936
        %v1158 = vunpack.c.h.b16 %v936
        %v1159 = vunpack.c.l.b16 %v937
        %v1160 = vunpack.c.h.b16 %v937
        %v1161 = vunpack.c.l.b16 %v938
        %v1162 = vunpack.c.h.b16 %v938
        %v1163 = vunpack.c.l.b16 %v939
        %v1164 = vunpack.c.h.b16 %v939
        %v1165 = vunpack.c.l.b16 %v940
        %v1166 = vunpack.c.h.b16 %v940
        %v1167 = vunpack.c.l.b16 %v941
        %v1168 = vunpack.c.h.b16 %v941
        %v1169 = vunpack.c.l.b16 %v942
        %v1170 = vunpack.c.h.b16 %v942
        %v1171 = vunpack.c.l.b16 %v943
        %v1172 = vunpack.c.h.b16 %v943
        %v1173 = vunpack.c.l.b16 %v944
        %v1174 = vunpack.c.h.b16 %v944
        %v1175 = vunpack.c.l.b16 %v945
        %v1176 = vunpack.c.h.b16 %v945
        %v1177 = vunpack.c.l.b16 %v946
        %v1178 = vunpack.c.h.b16 %v946
        %v1179 = vunpack.c.l.b16 %v947
        %v1180 = vunpack.c.h.b16 %v947
        %v1181 = vunpack.c.l.b16 %v948
        %v1182 = vunpack.c.h.b16 %v948
        %v1183 = vunpack.c.l.b16 %v949
        %v1184 = vunpack.c.h.b16 %v949
        %v1185 = vunpack.c.l.b16 %v950
        %v1186 = vunpack.c.h.b16 %v950
        %v1187 = vunpack.c.l.b16 %v951
        %v1188 = vunpack.c.h.b16 %v951
        %v1189 = vunpack.c.l.b16 %v952
        %v1190 = vunpack.c.h.b16 %v952
        %v1191 = vunpack.c.l.b16 %v953
        %v1192 = vunpack.c.h.b16 %v953
        %v1193 = vunpack.c.l.b16 %v954
        %v1194 = vunpack.c.h.b16 %v954
        %v1195 = vunpack.c.l.b16 %v955
        %v1196 = vunpack.c.h.b16 %v955
        %v1197 = vunpack.c.l.b16 %v956
        %v1198 = vunpack.c.h.b16 %v956
        %v1199 = vunpack.c.l.b16 %v957
        %v1200 = vunpack.c.h.b16 %v957
        %v1201 = vunpack.c.l.b16 %v958
        %v1202 = vunpack.c.h.b16 %v958
        %v1203 = vunpack.c.l.b16 %v959
        %v1204 = vunpack.c.h.b16 %v959
        %v1205 = vunpack.c.l.b16 %v960
        %v1206 = vunpack.c.h.b16 %v960
        %v1207 = vunpack.c.l.b16 %v961
        %v1208 = vunpack.c.h.b16 %v961
        %v1209 = vunpack.c.l.b16 %v962
        %v1210 = vunpack.c.h.b16 %v962
        %v1211 = vunpack.c.l.b16 %v963
        %v1212 = vunpack.c.h.b16 %v963
        %v1213 = vunpack.c.l.b16 %v964
        %v1214 = vunpack.c.h.b16 %v964
        %v1215 = vunpack.c.l.b16 %v965
        %v1216 = vunpack.c.h.b16 %v965
        %v1217 = vunpack.c.l.b16 %v966
        %v1218 = vunpack.c.h.b16 %v966
        %v1219 = vunpack.c.l.b16 %v967
        %v1220 = vunpack.c.h.b16 %v967
        %v1221 = vunpack.c.l.b16 %v968
        %v1222 = vunpack.c.h.b16 %v968
        %v1223 = vunpack.c.l.b16 %v969
        %v1224 = vunpack.c.h.b16 %v969
        %v1225 = vunpack.c.l.b16 %v970
        %v1226 = vunpack.c.h.b16 %v970
        %v1227 = vunpack.c.l.b16 %v971
        %v1228 = vunpack.c.h.b16 %v971
        %v1229 = vunpack.c.l.b16 %v972
        %v1230 = vunpack.c.h.b16 %v972
        %v1231 = vunpack.c.l.b16 %v973
        %v1232 = vunpack.c.h.b16 %v973
        %v1233 = vunpack.c.l.b16 %v974
        %v1234 = vunpack.c.h.b16 %v974
        %v1235 = vpack.c.b16 %v1111, %v1107
        %v1236 = vpack.c.b16 %v1112, %v1108
        %v1237 = vpack.c.b16 %v1113, %v1109
        %v1238 = vpack.c.b16 %v1114, %v1110
        %v1239 = vpack.c.b16 %v1119, %v1115
        %v1240 = vpack.c.b16 %v1120, %v1116
        %v1241 = vpack.c.b16 %v1121, %v1117
        %v1242 = vpack.c.b16 %v1122, %v1118
        %v1243 = vpack.c.b16 %v1127, %v1123
        %v1244 = vpack.c.b16 %v1128, %v1124
        %v1245 = vpack.c.b16 %v1129, %v1125
        %v1246 = vpack.c.b16 %v1130, %v1126
        %v1247 = vpack.c.b16 %v1135, %v1131
        %v1248 = vpack.c.b16 %v1136, %v1132
        %v1249 = vpack.c.b16 %v1137, %v1133
        %v1250 = vpack.c.b16 %v1138, %v1134
        %v1251 = vpack.c.b16 %v1143, %v1139
        %v1252 = vpack.c.b16 %v1144, %v1140
        %v1253 = vpack.c.b16 %v1145, %v1141
        %v1254 = vpack.c.b16 %v1146, %v1142
        %v1255 = vpack.c.b16 %v1151, %v1147
        %v1256 = vpack.c.b16 %v1152, %v1148
        %v1257 = vpack.c.b16 %v1153, %v1149
        %v1258 = vpack.c.b16 %v1154, %v1150
        %v1259 = vpack.c.b16 %v1159, %v1155
        %v1260 = vpack.c.b16 %v1160, %v1156
        %v1261 = vpack.c.b16 %v1161, %v1157
        %v1262 = vpack.c.b16 %v1162, %v1158
        %v1263 = vpack.c.b16 %v1167, %v1163
        %v1264 = vpack.c.b16 %v1168, %v1164
        %v1265 = vpack.c.b16 %v1169, %v1165
        %v1266 = vpack.c.b16 %v1170, %v1166
        %v1267 = vpack.c.b16 %v1175, %v1171
        %v1268 = vpack.c.b16 %v1176, %v1172
        %v1269 = vpack.c.b16 %v1177, %v1173
        %v1270 = vpack.c.b16 %v1178, %v1174
        %v1271 = vpack.c.b16 %v1183, %v1179
        %v1272 = vpack.c.b16 %v1184, %v1180
        %v1273 = vpack.c.b16 %v1185, %v1181
        %v1274 = vpack.c.b16 %v1186, %v1182
        %v1275 = vpack.c.b16 %v1191, %v1187
        %v1276 = vpack.c.b16 %v1192, %v1188
        %v1277 = vpack.c.b16 %v1193, %v1189
        %v1278 = vpack.c.b16 %v1194, %v1190
        %v1279 = vpack.c.b16 %v1199, %v1195
        %v1280 = vpack.c.b16 %v1200, %v1196
        %v1281 = vpack.c.b16 %v1201, %v1197
        %v1282 = vpack.c.b16 %v1202, %v1198
        %v1283 = vpack.c.b16 %v1207, %v1203
        %v1284 = vpack.c.b16 %v1208, %v1204
        %v1285 = vpack.c.b16 %v1209, %v1205
        %v1286 = vpack.c.b16 %v1210, %v1206
        %v1287 = vpack.c.b16 %v1215, %v1211
        %v1288 = vpack.c.b16 %v1216, %v1212
        %v1289 = vpack.c.b16 %v1217, %v1213
        %v1290 = vpack.c.b16 %v1218, %v1214
        %v1291 = vpack.c.b16 %v1223, %v1219
        %v1292 = vpack.c.b16 %v1224, %v1220
        %v1293 = vpack.c.b16 %v1225, %v1221
        %v1294 = vpack.c.b16 %v1226, %v1222
        %v1295 = vpack.c.b16 %v1231, %v1227
        %v1296 = vpack.c.b16 %v1232, %v1228
        %v1297 = vpack.c.b16 %v1233, %v1229
        %v1298 = vpack.c.b16 %v1234, %v1230
        %v1427 = vunpack.c.l.b16 %v975
        %v1428 = vunpack.c.l.b16 %v976
        %v1429 = vunpack.c.l.b16 %v977
        %v1430 = vunpack.c.l.b16 %v978
        %v1431 = vunpack.c.l.b16 %v979
        %v1432 = vunpack.c.l.b16 %v980
        %v1433 = vunpack.c.l.b16 %v981
        %v1434 = vunpack.c.l.b16 %v982
        %v1435 = vunpack.c.l.b16 %v983
        %v1436 = vunpack.c.l.b16 %v984
        %v1437 = vunpack.c.l.b16 %v985
        %v1438 = vunpack.c.l.b16 %v986
        %v1439 = vunpack.c.l.b16 %v987
        %v1440 = vunpack.c.l.b16 %v988
        %v1441 = vunpack.c.l.b16 %v989
        %v1442 = vunpack.c.l.b16 %v990
        %v1443 = vunpack.c.l.b16 %v991
        %v1444 = vunpack.c.l.b16 %v992
        %v1445 = vunpack.c.l.b16 %v993
        %v1446 = vunpack.c.l.b16 %v994
        %v1447 = vunpack.c.l.b16 %v995
        %v1448 = vunpack.c.l.b16 %v996
        %v1449 = vunpack.c.l.b16 %v997
        %v1450 = vunpack.c.l.b16 %v998
        %v1451 = vunpack.c.l.b16 %v999
        %v1452 = vunpack.c.l.b16 %v1000
        %v1453 = vunpack.c.l.b16 %v1001
        %v1454 = vunpack.c.l.b16 %v1002
        %v1455 = vunpack.c.l.b16 %v1003
        %v1456 = vunpack.c.l.b16 %v1004
        %v1457 = vunpack.c.l.b16 %v1005
        %v1458 = vunpack.c.l.b16 %v1006
        %v1459 = vunpack.c.l.b16 %v1007
        %v1460 = vunpack.c.l.b16 %v1008
        %v1461 = vunpack.c.l.b16 %v1009
        %v1462 = vunpack.c.l.b16 %v1010
        %v1463 = vunpack.c.l.b16 %v1011
        %v1464 = vunpack.c.l.b16 %v1012
        %v1465 = vunpack.c.l.b16 %v1013
        %v1466 = vunpack.c.l.b16 %v1014
        %v1467 = vunpack.c.l.b16 %v1015
        %v1468 = vunpack.c.l.b16 %v1016
        %v1469 = vunpack.c.l.b16 %v1017
        %v1470 = vunpack.c.l.b16 %v1018
        %v1471 = vunpack.c.l.b16 %v1019
        %v1472 = vunpack.c.l.b16 %v1020
        %v1473 = vunpack.c.l.b16 %v1021
        %v1474 = vunpack.c.l.b16 %v1022
        %v1475 = vunpack.c.l.b16 %v1023
        %v1476 = vunpack.c.l.b16 %v1024
        %v1477 = vunpack.c.l.b16 %v1025
        %v1478 = vunpack.c.l.b16 %v1026
        %v1479 = vunpack.c.l.b16 %v1027
        %v1480 = vunpack.c.l.b16 %v1028
        %v1481 = vunpack.c.l.b16 %v1029
        %v1482 = vunpack.c.l.b16 %v1030
        %v1483 = vunpack.c.l.b16 %v1031
        %v1484 = vunpack.c.l.b16 %v1032
        %v1485 = vunpack.c.l.b16 %v1033
        %v1486 = vunpack.c.l.b16 %v1034
        %v1487 = vunpack.c.l.b16 %v1035
        %v1488 = vunpack.c.l.b16 %v1036
        %v1489 = vunpack.c.l.b16 %v1037
        %v1490 = vunpack.c.l.b16 %v1038
        %v1491 = vpack.c.b16 %v1428, %v1427
        %v1492 = vpack.c.b16 %v1430, %v1429
        %v1493 = vpack.c.b16 %v1432, %v1431
        %v1494 = vpack.c.b16 %v1434, %v1433
        %v1495 = vpack.c.b16 %v1436, %v1435
        %v1496 = vpack.c.b16 %v1438, %v1437
        %v1497 = vpack.c.b16 %v1440, %v1439
        %v1498 = vpack.c.b16 %v1442, %v1441
        %v1499 = vpack.c.b16 %v1444, %v1443
        %v1500 = vpack.c.b16 %v1446, %v1445
        %v1501 = vpack.c.b16 %v1448, %v1447
        %v1502 = vpack.c.b16 %v1450, %v1449
        %v1503 = vpack.c.b16 %v1452, %v1451
        %v1504 = vpack.c.b16 %v1454, %v1453
        %v1505 = vpack.c.b16 %v1456, %v1455
        %v1506 = vpack.c.b16 %v1458, %v1457
        %v1507 = vpack.c.b16 %v1460, %v1459
        %v1508 = vpack.c.b16 %v1462, %v1461
        %v1509 = vpack.c.b16 %v1464, %v1463
        %v1510 = vpack.c.b16 %v1466, %v1465
        %v1511 = vpack.c.b16 %v1468, %v1467
        %v1512 = vpack.c.b16 %v1470, %v1469
        %v1513 = vpack.c.b16 %v1472, %v1471
        %v1514 = vpack.c.b16 %v1474, %v1473
        %v1515 = vpack.c.b16 %v1476, %v1475
        %v1516 = vpack.c.b16 %v1478, %v1477
        %v1517 = vpack.c.b16 %v1480, %v1479
        %v1518 = vpack.c.b16 %v1482, %v1481
        %v1519 = vpack.c.b16 %v1484, %v1483
        %v1520 = vpack.c.b16 %v1486, %v1485
        %v1521 = vpack.c.b16 %v1488, %v1487
        %v1522 = vpack.c.b16 %v1490, %v1489
        %1555 = vmatpush.bf16.msra.mxu0 %v1498
        %1556 = vmatpush.bf16.msra.mxu0 %v1497
        %1557 = vmatpush.bf16.msra.mxu0 %v1496
        %1558 = vmatpush.bf16.msra.mxu0 %v1495
        %1559 = vmatpush.bf16.msra.mxu0 %v1494
        %1560 = vmatpush.bf16.msra.mxu0 %v1493
        %1561 = vmatpush.bf16.msra.mxu0 %v1492
        %1562 = vmatpush.bf16.msra.mxu0 %v1491
        %1563 = vmatmul.bf16.gmra.mxu0 %v1235
        %v1564 = vpop.f32.mrf.mxu0
        %v1565 = vadd.f32 %v1041, %v1564
        %v1566 = vpop.f32.mrf.mxu0
        %v1567 = vadd.f32 %v1041, %v1566
        %1568 = vmatmul.bf16.gmra.mxu0 %v1239
        %v1569 = vpop.f32.mrf.mxu0
        %v1570 = vadd.f32 %v1041, %v1569
        %v1571 = vpop.f32.mrf.mxu0
        %v1572 = vadd.f32 %v1041, %v1571
        %1573 = vmatmul.bf16.gmra.mxu0 %v1243
        %v1574 = vpop.f32.mrf.mxu0
        %v1575 = vadd.f32 %v1041, %v1574
        %v1576 = vpop.f32.mrf.mxu0
        %v1577 = vadd.f32 %v1041, %v1576
        %1578 = vmatmul.bf16.gmra.mxu0 %v1247
        %v1579 = vpop.f32.mrf.mxu0
        %v1580 = vadd.f32 %v1041, %v1579
        %v1581 = vpop.f32.mrf.mxu0
        %v1582 = vadd.f32 %v1041, %v1581
        %1583 = vmatmul.bf16.gmra.mxu0 %v1251
        %v1584 = vpop.f32.mrf.mxu0
        %v1585 = vadd.f32 %v1041, %v1584
        %v1586 = vpop.f32.mrf.mxu0
        %v1587 = vadd.f32 %v1041, %v1586
        %1588 = vmatmul.bf16.gmra.mxu0 %v1255
        %v1589 = vpop.f32.mrf.mxu0
        %v1590 = vadd.f32 %v1041, %v1589
        %v1591 = vpop.f32.mrf.mxu0
        %v1592 = vadd.f32 %v1041, %v1591
        %1593 = vmatmul.bf16.gmra.mxu0 %v1259
        %v1594 = vpop.f32.mrf.mxu0
        %v1595 = vadd.f32 %v1041, %v1594
        %v1596 = vpop.f32.mrf.mxu0
        %v1597 = vadd.f32 %v1041, %v1596
        %1598 = vmatmul.bf16.gmra.mxu0 %v1263
        %v1599 = vpop.f32.mrf.mxu0
        %v1600 = vadd.f32 %v1041, %v1599
        %v1601 = vpop.f32.mrf.mxu0
        %v1602 = vadd.f32 %v1041, %v1601
        %1603 = vmatmul.bf16.gmra.mxu0 %v1267
        %v1604 = vpop.f32.mrf.mxu0
        %v1605 = vadd.f32 %v1041, %v1604
        %v1606 = vpop.f32.mrf.mxu0
        %v1607 = vadd.f32 %v1041, %v1606
        %1608 = vmatmul.bf16.gmra.mxu0 %v1271
        %v1609 = vpop.f32.mrf.mxu0
        %v1610 = vadd.f32 %v1041, %v1609
        %v1611 = vpop.f32.mrf.mxu0
        %v1612 = vadd.f32 %v1041, %v1611
        %1613 = vmatmul.bf16.gmra.mxu0 %v1275
        %v1614 = vpop.f32.mrf.mxu0
        %v1615 = vadd.f32 %v1041, %v1614
        %v1616 = vpop.f32.mrf.mxu0
        %v1617 = vadd.f32 %v1041, %v1616
        %1618 = vmatmul.bf16.gmra.mxu0 %v1279
        %v1619 = vpop.f32.mrf.mxu0
        %v1620 = vadd.f32 %v1041, %v1619
        %v1621 = vpop.f32.mrf.mxu0
        %v1622 = vadd.f32 %v1041, %v1621
        %1623 = vmatmul.bf16.gmra.mxu0 %v1283
        %v1624 = vpop.f32.mrf.mxu0
        %v1625 = vadd.f32 %v1041, %v1624
        %v1626 = vpop.f32.mrf.mxu0
        %v1627 = vadd.f32 %v1041, %v1626
        %1628 = vmatmul.bf16.gmra.mxu0 %v1287
        %v1629 = vpop.f32.mrf.mxu0
        %v1630 = vadd.f32 %v1041, %v1629
        %v1631 = vpop.f32.mrf.mxu0
        %v1632 = vadd.f32 %v1041, %v1631
        %1633 = vmatmul.bf16.gmra.mxu0 %v1291
        %v1634 = vpop.f32.mrf.mxu0
        %v1635 = vadd.f32 %v1041, %v1634
        %v1636 = vpop.f32.mrf.mxu0
        %v1637 = vadd.f32 %v1041, %v1636
        %1638 = vmatmul.bf16.gmra.mxu0 %v1295
        %v1639 = vpop.f32.mrf.mxu0
        %v1640 = vadd.f32 %v1041, %v1639
        %v1641 = vpop.f32.mrf.mxu0
        %v1642 = vadd.f32 %v1041, %v1641
        %1643 = vdwg.mxu0
        %1644 = vmatpush.bf16.msra.mxu0 %v1506
        %1645 = vmatpush.bf16.msra.mxu0 %v1505
        %1646 = vmatpush.bf16.msra.mxu0 %v1504
        %1647 = vmatpush.bf16.msra.mxu0 %v1503
        %1648 = vmatpush.bf16.msra.mxu0 %v1502
        %1649 = vmatpush.bf16.msra.mxu0 %v1501
        %1650 = vmatpush.bf16.msra.mxu0 %v1500
        %1651 = vmatpush.bf16.msra.mxu0 %v1499
        %1652 = vmatmul.bf16.gmra.mxu0 %v1236
        %v1653 = vpop.f32.mrf.mxu0
        %v1654 = vadd.f32 %v1565, %v1653
        %v1655 = vpop.f32.mrf.mxu0
        %v1656 = vadd.f32 %v1567, %v1655
        %1657 = vmatmul.bf16.gmra.mxu0 %v1240
        %v1658 = vpop.f32.mrf.mxu0
        %v1659 = vadd.f32 %v1570, %v1658
        %v1660 = vpop.f32.mrf.mxu0
        %v1661 = vadd.f32 %v1572, %v1660
        %1662 = vmatmul.bf16.gmra.mxu0 %v1244
        %v1663 = vpop.f32.mrf.mxu0
        %v1664 = vadd.f32 %v1575, %v1663
        %v1665 = vpop.f32.mrf.mxu0
        %v1666 = vadd.f32 %v1577, %v1665
        %1667 = vmatmul.bf16.gmra.mxu0 %v1248
        %v1668 = vpop.f32.mrf.mxu0
        %v1669 = vadd.f32 %v1580, %v1668
        %v1670 = vpop.f32.mrf.mxu0
        %v1671 = vadd.f32 %v1582, %v1670
        %1672 = vmatmul.bf16.gmra.mxu0 %v1252
        %v1673 = vpop.f32.mrf.mxu0
        %v1674 = vadd.f32 %v1585, %v1673
        %v1675 = vpop.f32.mrf.mxu0
        %v1676 = vadd.f32 %v1587, %v1675
        %1677 = vmatmul.bf16.gmra.mxu0 %v1256
        %v1678 = vpop.f32.mrf.mxu0
        %v1679 = vadd.f32 %v1590, %v1678
        %v1680 = vpop.f32.mrf.mxu0
        %v1681 = vadd.f32 %v1592, %v1680
        %1682 = vmatmul.bf16.gmra.mxu0 %v1260
        %v1683 = vpop.f32.mrf.mxu0
        %v1684 = vadd.f32 %v1595, %v1683
        %v1685 = vpop.f32.mrf.mxu0
        %v1686 = vadd.f32 %v1597, %v1685
        %1687 = vmatmul.bf16.gmra.mxu0 %v1264
        %v1688 = vpop.f32.mrf.mxu0
        %v1689 = vadd.f32 %v1600, %v1688
        %v1690 = vpop.f32.mrf.mxu0
        %v1691 = vadd.f32 %v1602, %v1690
        %1692 = vmatmul.bf16.gmra.mxu0 %v1268
        %v1693 = vpop.f32.mrf.mxu0
        %v1694 = vadd.f32 %v1605, %v1693
        %v1695 = vpop.f32.mrf.mxu0
        %v1696 = vadd.f32 %v1607, %v1695
        %1697 = vmatmul.bf16.gmra.mxu0 %v1272
        %v1698 = vpop.f32.mrf.mxu0
        %v1699 = vadd.f32 %v1610, %v1698
        %v1700 = vpop.f32.mrf.mxu0
        %v1701 = vadd.f32 %v1612, %v1700
        %1702 = vmatmul.bf16.gmra.mxu0 %v1276
        %v1703 = vpop.f32.mrf.mxu0
        %v1704 = vadd.f32 %v1615, %v1703
        %v1705 = vpop.f32.mrf.mxu0
        %v1706 = vadd.f32 %v1617, %v1705
        %1707 = vmatmul.bf16.gmra.mxu0 %v1280
        %v1708 = vpop.f32.mrf.mxu0
        %v1709 = vadd.f32 %v1620, %v1708
        %v1710 = vpop.f32.mrf.mxu0
        %v1711 = vadd.f32 %v1622, %v1710
        %1712 = vmatmul.bf16.gmra.mxu0 %v1284
        %v1713 = vpop.f32.mrf.mxu0
        %v1714 = vadd.f32 %v1625, %v1713
        %v1715 = vpop.f32.mrf.mxu0
        %v1716 = vadd.f32 %v1627, %v1715
        %1717 = vmatmul.bf16.gmra.mxu0 %v1288
        %v1718 = vpop.f32.mrf.mxu0
        %v1719 = vadd.f32 %v1630, %v1718
        %v1720 = vpop.f32.mrf.mxu0
        %v1721 = vadd.f32 %v1632, %v1720
        %1722 = vmatmul.bf16.gmra.mxu0 %v1292
        %v1723 = vpop.f32.mrf.mxu0
        %v1724 = vadd.f32 %v1635, %v1723
        %v1725 = vpop.f32.mrf.mxu0
        %v1726 = vadd.f32 %v1637, %v1725
        %1727 = vmatmul.bf16.gmra.mxu0 %v1296
        %v1728 = vpop.f32.mrf.mxu0
        %v1729 = vadd.f32 %v1640, %v1728
        %v1730 = vpop.f32.mrf.mxu0
        %v1731 = vadd.f32 %v1642, %v1730
        %1732 = vdwg.mxu0
        %1733 = vmatpush.bf16.msra.mxu0 %v1514
        %1734 = vmatpush.bf16.msra.mxu0 %v1513
        %1735 = vmatpush.bf16.msra.mxu0 %v1512
        %1736 = vmatpush.bf16.msra.mxu0 %v1511
        %1737 = vmatpush.bf16.msra.mxu0 %v1510
        %1738 = vmatpush.bf16.msra.mxu0 %v1509
        %1739 = vmatpush.bf16.msra.mxu0 %v1508
        %1740 = vmatpush.bf16.msra.mxu0 %v1507
        %1741 = vmatmul.bf16.gmra.mxu0 %v1237
        %v1742 = vpop.f32.mrf.mxu0
        %v1743 = vadd.f32 %v1654, %v1742
        %v1744 = vpop.f32.mrf.mxu0
        %v1745 = vadd.f32 %v1656, %v1744
        %1746 = vmatmul.bf16.gmra.mxu0 %v1241
        %v1747 = vpop.f32.mrf.mxu0
        %v1748 = vadd.f32 %v1659, %v1747
        %v1749 = vpop.f32.mrf.mxu0
        %v1750 = vadd.f32 %v1661, %v1749
        %1751 = vmatmul.bf16.gmra.mxu0 %v1245
        %v1752 = vpop.f32.mrf.mxu0
        %v1753 = vadd.f32 %v1664, %v1752
        %v1754 = vpop.f32.mrf.mxu0
        %v1755 = vadd.f32 %v1666, %v1754
        %1756 = vmatmul.bf16.gmra.mxu0 %v1249
        %v1757 = vpop.f32.mrf.mxu0
        %v1758 = vadd.f32 %v1669, %v1757
        %v1759 = vpop.f32.mrf.mxu0
        %v1760 = vadd.f32 %v1671, %v1759
        %1761 = vmatmul.bf16.gmra.mxu0 %v1253
        %v1762 = vpop.f32.mrf.mxu0
        %v1763 = vadd.f32 %v1674, %v1762
        %v1764 = vpop.f32.mrf.mxu0
        %v1765 = vadd.f32 %v1676, %v1764
        %1766 = vmatmul.bf16.gmra.mxu0 %v1257
        %v1767 = vpop.f32.mrf.mxu0
        %v1768 = vadd.f32 %v1679, %v1767
        %v1769 = vpop.f32.mrf.mxu0
        %v1770 = vadd.f32 %v1681, %v1769
        %1771 = vmatmul.bf16.gmra.mxu0 %v1261
        %v1772 = vpop.f32.mrf.mxu0
        %v1773 = vadd.f32 %v1684, %v1772
        %v1774 = vpop.f32.mrf.mxu0
        %v1775 = vadd.f32 %v1686, %v1774
        %1776 = vmatmul.bf16.gmra.mxu0 %v1265
        %v1777 = vpop.f32.mrf.mxu0
        %v1778 = vadd.f32 %v1689, %v1777
        %v1779 = vpop.f32.mrf.mxu0
        %v1780 = vadd.f32 %v1691, %v1779
        %1781 = vmatmul.bf16.gmra.mxu0 %v1269
        %v1782 = vpop.f32.mrf.mxu0
        %v1783 = vadd.f32 %v1694, %v1782
        %v1784 = vpop.f32.mrf.mxu0
        %v1785 = vadd.f32 %v1696, %v1784
        %1786 = vmatmul.bf16.gmra.mxu0 %v1273
        %v1787 = vpop.f32.mrf.mxu0
        %v1788 = vadd.f32 %v1699, %v1787
        %v1789 = vpop.f32.mrf.mxu0
        %v1790 = vadd.f32 %v1701, %v1789
        %1791 = vmatmul.bf16.gmra.mxu0 %v1277
        %v1792 = vpop.f32.mrf.mxu0
        %v1793 = vadd.f32 %v1704, %v1792
        %v1794 = vpop.f32.mrf.mxu0
        %v1795 = vadd.f32 %v1706, %v1794
        %1796 = vmatmul.bf16.gmra.mxu0 %v1281
        %v1797 = vpop.f32.mrf.mxu0
        %v1798 = vadd.f32 %v1709, %v1797
        %v1799 = vpop.f32.mrf.mxu0
        %v1800 = vadd.f32 %v1711, %v1799
        %1801 = vmatmul.bf16.gmra.mxu0 %v1285
        %v1802 = vpop.f32.mrf.mxu0
        %v1803 = vadd.f32 %v1714, %v1802
        %v1804 = vpop.f32.mrf.mxu0
        %v1805 = vadd.f32 %v1716, %v1804
        %1806 = vmatmul.bf16.gmra.mxu0 %v1289
        %v1807 = vpop.f32.mrf.mxu0
        %v1808 = vadd.f32 %v1719, %v1807
        %v1809 = vpop.f32.mrf.mxu0
        %v1810 = vadd.f32 %v1721, %v1809
        %1811 = vmatmul.bf16.gmra.mxu0 %v1293
        %v1812 = vpop.f32.mrf.mxu0
        %v1813 = vadd.f32 %v1724, %v1812
        %v1814 = vpop.f32.mrf.mxu0
        %v1815 = vadd.f32 %v1726, %v1814
        %1816 = vmatmul.bf16.gmra.mxu0 %v1297
        %v1817 = vpop.f32.mrf.mxu0
        %v1818 = vadd.f32 %v1729, %v1817
        %v1819 = vpop.f32.mrf.mxu0
        %v1820 = vadd.f32 %v1731, %v1819
        %1821 = vdwg.mxu0
        %1822 = vmatpush.bf16.msra.mxu0 %v1522
        %1823 = vmatpush.bf16.msra.mxu0 %v1521
        %1824 = vmatpush.bf16.msra.mxu0 %v1520
        %1825 = vmatpush.bf16.msra.mxu0 %v1519
        %1826 = vmatpush.bf16.msra.mxu0 %v1518
        %1827 = vmatpush.bf16.msra.mxu0 %v1517
        %1828 = vmatpush.bf16.msra.mxu0 %v1516
        %1829 = vmatpush.bf16.msra.mxu0 %v1515
        %1830 = vmatmul.bf16.gmra.mxu0 %v1238
        %v1831 = vpop.f32.mrf.mxu0
        %v1832 = vadd.f32 %v1743, %v1831
        %v1833 = vpop.f32.mrf.mxu0
        %v1834 = vadd.f32 %v1745, %v1833
        %1835 = vmatmul.bf16.gmra.mxu0 %v1242
        %v1836 = vpop.f32.mrf.mxu0
        %v1837 = vadd.f32 %v1748, %v1836
        %v1838 = vpop.f32.mrf.mxu0
        %v1839 = vadd.f32 %v1750, %v1838
        %1840 = vmatmul.bf16.gmra.mxu0 %v1246
        %v1841 = vpop.f32.mrf.mxu0
        %v1842 = vadd.f32 %v1753, %v1841
        %v1843 = vpop.f32.mrf.mxu0
        %v1844 = vadd.f32 %v1755, %v1843
        %1845 = vmatmul.bf16.gmra.mxu0 %v1250
        %v1846 = vpop.f32.mrf.mxu0
        %v1847 = vadd.f32 %v1758, %v1846
        %v1848 = vpop.f32.mrf.mxu0
        %v1849 = vadd.f32 %v1760, %v1848
        %1850 = vmatmul.bf16.gmra.mxu0 %v1254
        %v1851 = vpop.f32.mrf.mxu0
        %v1852 = vadd.f32 %v1763, %v1851
        %v1853 = vpop.f32.mrf.mxu0
        %v1854 = vadd.f32 %v1765, %v1853
        %1855 = vmatmul.bf16.gmra.mxu0 %v1258
        %v1856 = vpop.f32.mrf.mxu0
        %v1857 = vadd.f32 %v1768, %v1856
        %v1858 = vpop.f32.mrf.mxu0
        %v1859 = vadd.f32 %v1770, %v1858
        %1860 = vmatmul.bf16.gmra.mxu0 %v1262
        %v1861 = vpop.f32.mrf.mxu0
        %v1862 = vadd.f32 %v1773, %v1861
        %v1863 = vpop.f32.mrf.mxu0
        %v1864 = vadd.f32 %v1775, %v1863
        %1865 = vmatmul.bf16.gmra.mxu0 %v1266
        %v1866 = vpop.f32.mrf.mxu0
        %v1867 = vadd.f32 %v1778, %v1866
        %v1868 = vpop.f32.mrf.mxu0
        %v1869 = vadd.f32 %v1780, %v1868
        %1870 = vmatmul.bf16.gmra.mxu0 %v1270
        %v1871 = vpop.f32.mrf.mxu0
        %v1872 = vadd.f32 %v1783, %v1871
        %v1873 = vpop.f32.mrf.mxu0
        %v1874 = vadd.f32 %v1785, %v1873
        %1875 = vmatmul.bf16.gmra.mxu0 %v1274
        %v1876 = vpop.f32.mrf.mxu0
        %v1877 = vadd.f32 %v1788, %v1876
        %v1878 = vpop.f32.mrf.mxu0
        %v1879 = vadd.f32 %v1790, %v1878
        %1880 = vmatmul.bf16.gmra.mxu0 %v1278
        %v1881 = vpop.f32.mrf.mxu0
        %v1882 = vadd.f32 %v1793, %v1881
        %v1883 = vpop.f32.mrf.mxu0
        %v1884 = vadd.f32 %v1795, %v1883
        %1885 = vmatmul.bf16.gmra.mxu0 %v1282
        %v1886 = vpop.f32.mrf.mxu0
        %v1887 = vadd.f32 %v1798, %v1886
        %v1888 = vpop.f32.mrf.mxu0
        %v1889 = vadd.f32 %v1800, %v1888
        %1890 = vmatmul.bf16.gmra.mxu0 %v1286
        %v1891 = vpop.f32.mrf.mxu0
        %v1892 = vadd.f32 %v1803, %v1891
        %v1893 = vpop.f32.mrf.mxu0
        %v1894 = vadd.f32 %v1805, %v1893
        %1895 = vmatmul.bf16.gmra.mxu0 %v1290
        %v1896 = vpop.f32.mrf.mxu0
        %v1897 = vadd.f32 %v1808, %v1896
        %v1898 = vpop.f32.mrf.mxu0
        %v1899 = vadd.f32 %v1810, %v1898
        %1900 = vmatmul.bf16.gmra.mxu0 %v1294
        %v1901 = vpop.f32.mrf.mxu0
        %v1902 = vadd.f32 %v1813, %v1901
        %v1903 = vpop.f32.mrf.mxu0
        %v1904 = vadd.f32 %v1815, %v1903
        %1905 = vmatmul.bf16.gmra.mxu0 %v1298
        %v1906 = vpop.f32.mrf.mxu0
        %v1907 = vadd.f32 %v1818, %v1906
        %v1908 = vpop.f32.mrf.mxu0
        %v1909 = vadd.f32 %v1820, %v1908
        %1910 = vdwg.mxu0
        %p1911 = scmp.eq.s32.totalorder %s26, 2
        %p1912 = scmp.ne.s32.totalorder %s26, 2
        // Predicated region
        $region58: #{tpu_custom_call.1} parent=31 // pred_check
          %p1913 = pneg %p1912
        $region59: #{tpu_custom_call.1} parent=31 // pred_check_branch
          %1915 = sbr.rel (%p1913) target = $region61
        $region60: #{tpu_custom_call.1} parent=31 // pred_region
          %v1916 = vmax.f32 %v1832, 0.0
          %v1917 = vmax.f32 %v1834, 0.0
          %v1918 = vmax.f32 %v1837, 0.0
          %v1919 = vmax.f32 %v1839, 0.0
          %v1920 = vmax.f32 %v1842, 0.0
          %v1921 = vmax.f32 %v1844, 0.0
          %v1922 = vmax.f32 %v1847, 0.0
          %v1923 = vmax.f32 %v1849, 0.0
          %v1924 = vmax.f32 %v1852, 0.0
          %v1925 = vmax.f32 %v1854, 0.0
          %v1926 = vmax.f32 %v1857, 0.0
          %v1927 = vmax.f32 %v1859, 0.0
          %v1928 = vmax.f32 %v1862, 0.0
          %v1929 = vmax.f32 %v1864, 0.0
          %v1930 = vmax.f32 %v1867, 0.0
          %v1931 = vmax.f32 %v1869, 0.0
          %v1932 = vmax.f32 %v1872, 0.0
          %v1933 = vmax.f32 %v1874, 0.0
          %v1934 = vmax.f32 %v1877, 0.0
          %v1935 = vmax.f32 %v1879, 0.0
          %v1936 = vmax.f32 %v1882, 0.0
          %v1937 = vmax.f32 %v1884, 0.0
          %v1938 = vmax.f32 %v1887, 0.0
          %v1939 = vmax.f32 %v1889, 0.0
          %v1940 = vmax.f32 %v1892, 0.0
          %v1941 = vmax.f32 %v1894, 0.0
          %v1942 = vmax.f32 %v1897, 0.0
          %v1943 = vmax.f32 %v1899, 0.0
          %v1944 = vmax.f32 %v1902, 0.0
          %v1945 = vmax.f32 %v1904, 0.0
          %v1946 = vmax.f32 %v1907, 0.0
          %v1947 = vmax.f32 %v1909, 0.0
          %v1948 = vpack.c.bf16 %v1916, %v1916
          %v1949 = vpack.c.bf16 %v1917, %v1917
          %v1950 = vpack.c.bf16 %v1918, %v1918
          %v1951 = vpack.c.bf16 %v1919, %v1919
          %v1952 = vpack.c.bf16 %v1920, %v1920
          %v1953 = vpack.c.bf16 %v1921, %v1921
          %v1954 = vpack.c.bf16 %v1922, %v1922
          %v1955 = vpack.c.bf16 %v1923, %v1923
          %v1956 = vpack.c.bf16 %v1924, %v1924
          %v1957 = vpack.c.bf16 %v1925, %v1925
          %v1958 = vpack.c.bf16 %v1926, %v1926
          %v1959 = vpack.c.bf16 %v1927, %v1927
          %v1960 = vpack.c.bf16 %v1928, %v1928
          %v1961 = vpack.c.bf16 %v1929, %v1929
          %v1962 = vpack.c.bf16 %v1930, %v1930
          %v1963 = vpack.c.bf16 %v1931, %v1931
          %v1964 = vpack.c.bf16 %v1932, %v1932
          %v1965 = vpack.c.bf16 %v1933, %v1933
          %v1966 = vpack.c.bf16 %v1934, %v1934
          %v1967 = vpack.c.bf16 %v1935, %v1935
          %v1968 = vpack.c.bf16 %v1936, %v1936
          %v1969 = vpack.c.bf16 %v1937, %v1937
          %v1970 = vpack.c.bf16 %v1938, %v1938
          %v1971 = vpack.c.bf16 %v1939, %v1939
          %v1972 = vpack.c.bf16 %v1940, %v1940
          %v1973 = vpack.c.bf16 %v1941, %v1941
          %v1974 = vpack.c.bf16 %v1942, %v1942
          %v1975 = vpack.c.bf16 %v1943, %v1943
          %v1976 = vpack.c.bf16 %v1944, %v1944
          %v1977 = vpack.c.bf16 %v1945, %v1945
          %v1978 = vpack.c.bf16 %v1946, %v1946
          %v1979 = vpack.c.bf16 %v1947, %v1947
          %s1980 = smul.addr %s906, 4
          %s1981 = scalar_lea.vmem [#allocation2], %s1980
          %1982 = vst [vmem:[%s1981] sm:$0xf] %v1948
          %1983 = vst [vmem:[%s1981 + $0x4] sm:$0xf] %v1949
          %1984 = vst [vmem:[%s1981 + $0x8] sm:$0xf] %v1950
          %1985 = vst [vmem:[%s1981 + $0xc] sm:$0xf] %v1951
          %1986 = vst [vmem:[%s1981 + $0x10] sm:$0xf] %v1952
          %1987 = vst [vmem:[%s1981 + $0x14] sm:$0xf] %v1953
          %1988 = vst [vmem:[%s1981 + $0x18] sm:$0xf] %v1954
          %1989 = vst [vmem:[%s1981 + $0x1c] sm:$0xf] %v1955
          %1990 = vst [vmem:[%s1981 + $0x20] sm:$0xf] %v1956
          %1991 = vst [vmem:[%s1981 + $0x24] sm:$0xf] %v1957
          %1992 = vst [vmem:[%s1981 + $0x28] sm:$0xf] %v1958
          %1993 = vst [vmem:[%s1981 + $0x2c] sm:$0xf] %v1959
          %1994 = vst [vmem:[%s1981 + $0x30] sm:$0xf] %v1960
          %1995 = vst [vmem:[%s1981 + $0x34] sm:$0xf] %v1961
          %1996 = vst [vmem:[%s1981 + $0x38] sm:$0xf] %v1962
          %1997 = vst [vmem:[%s1981 + $0x3c] sm:$0xf] %v1963
          %1998 = vst [vmem:[%s1981 + $0x40] sm:$0xf] %v1964
          %1999 = vst [vmem:[%s1981 + $0x44] sm:$0xf] %v1965
          %2000 = vst [vmem:[%s1981 + $0x48] sm:$0xf] %v1966
          %2001 = vst [vmem:[%s1981 + $0x4c] sm:$0xf] %v1967
          %2002 = vst [vmem:[%s1981 + $0x50] sm:$0xf] %v1968
          %2003 = vst [vmem:[%s1981 + $0x54] sm:$0xf] %v1969
          %2004 = vst [vmem:[%s1981 + $0x58] sm:$0xf] %v1970
          %2005 = vst [vmem:[%s1981 + $0x5c] sm:$0xf] %v1971
          %2006 = vst [vmem:[%s1981 + $0x60] sm:$0xf] %v1972
          %2007 = vst [vmem:[%s1981 + $0x64] sm:$0xf] %v1973
          %2008 = vst [vmem:[%s1981 + $0x68] sm:$0xf] %v1974
          %2009 = vst [vmem:[%s1981 + $0x6c] sm:$0xf] %v1975
          %2010 = vst [vmem:[%s1981 + $0x70] sm:$0xf] %v1976
          %2011 = vst [vmem:[%s1981 + $0x74] sm:$0xf] %v1977
          %2012 = vst [vmem:[%s1981 + $0x78] sm:$0xf] %v1978
          %2013 = vst [vmem:[%s1981 + $0x7c] sm:$0xf] %v1979
        $region61: #{tpu_custom_call.1} parent=31 // pred_fallthru
          _
        // Predicated region
        $region62: #{tpu_custom_call.1} parent=31 // pred_check
          %p2014 = pneg %p1911
        $region63: #{tpu_custom_call.1} parent=31 // pred_check_branch
          %2016 = sbr.rel (%p2014) target = $region65
        $region64: #{tpu_custom_call.1} parent=31 // pred_region
          %v2017 = vlaneseq
          %v2018 = vand.u32 %v2017, 127
          %vm2019 = vcmp.lt.s32.totalorder %v2018, 7
          %v2020 = vsel %vm2019, %v1832, -inf
          %v2021 = vsel %vm2019, %v1834, -inf
          %v2022 = vsel %vm2019, %v1837, -inf
          %v2023 = vsel %vm2019, %v1839, -inf
          %v2024 = vsel %vm2019, %v1842, -inf
          %v2025 = vsel %vm2019, %v1844, -inf
          %v2026 = vsel %vm2019, %v1847, -inf
          %v2027 = vsel %vm2019, %v1849, -inf
          %v2028 = vsel %vm2019, %v1852, -inf
          %v2029 = vsel %vm2019, %v1854, -inf
          %v2030 = vsel %vm2019, %v1857, -inf
          %v2031 = vsel %vm2019, %v1859, -inf
          %v2032 = vsel %vm2019, %v1862, -inf
          %v2033 = vsel %vm2019, %v1864, -inf
          %v2034 = vsel %vm2019, %v1867, -inf
          %v2035 = vsel %vm2019, %v1869, -inf
          %v2036 = vsel %vm2019, %v1872, -inf
          %v2037 = vsel %vm2019, %v1874, -inf
          %v2038 = vsel %vm2019, %v1877, -inf
          %v2039 = vsel %vm2019, %v1879, -inf
          %v2040 = vsel %vm2019, %v1882, -inf
          %v2041 = vsel %vm2019, %v1884, -inf
          %v2042 = vsel %vm2019, %v1887, -inf
          %v2043 = vsel %vm2019, %v1889, -inf
          %v2044 = vsel %vm2019, %v1892, -inf
          %v2045 = vsel %vm2019, %v1894, -inf
          %v2046 = vsel %vm2019, %v1897, -inf
          %v2047 = vsel %vm2019, %v1899, -inf
          %v2048 = vsel %vm2019, %v1902, -inf
          %v2049 = vsel %vm2019, %v1904, -inf
          %v2050 = vsel %vm2019, %v1907, -inf
          %v2051 = vsel %vm2019, %v1909, -inf
          %2052 = vmax.xlane.f32.xlu0 %v2020
          %v2053 = vpop.xlane.xlu0 %2052
          %2054 = vmax.xlane.f32.xlu0 %v2021
          %v2055 = vpop.xlane.xlu0 %2054
          %2056 = vmax.xlane.f32.xlu0 %v2022
          %v2057 = vpop.xlane.xlu0 %2056
          %2058 = vmax.xlane.f32.xlu0 %v2023
          %v2059 = vpop.xlane.xlu0 %2058
          %2060 = vmax.xlane.f32.xlu0 %v2024
          %v2061 = vpop.xlane.xlu0 %2060
          %2062 = vmax.xlane.f32.xlu0 %v2025
          %v2063 = vpop.xlane.xlu0 %2062
          %2064 = vmax.xlane.f32.xlu0 %v2026
          %v2065 = vpop.xlane.xlu0 %2064
          %2066 = vmax.xlane.f32.xlu0 %v2027
          %v2067 = vpop.xlane.xlu0 %2066
          %2068 = vmax.xlane.f32.xlu0 %v2028
          %v2069 = vpop.xlane.xlu0 %2068
          %2070 = vmax.xlane.f32.xlu0 %v2029
          %v2071 = vpop.xlane.xlu0 %2070
          %2072 = vmax.xlane.f32.xlu0 %v2030
          %v2073 = vpop.xlane.xlu0 %2072
          %2074 = vmax.xlane.f32.xlu0 %v2031
          %v2075 = vpop.xlane.xlu0 %2074
          %2076 = vmax.xlane.f32.xlu0 %v2032
          %v2077 = vpop.xlane.xlu0 %2076
          %2078 = vmax.xlane.f32.xlu0 %v2033
          %v2079 = vpop.xlane.xlu0 %2078
          %2080 = vmax.xlane.f32.xlu0 %v2034
          %v2081 = vpop.xlane.xlu0 %2080
          %2082 = vmax.xlane.f32.xlu0 %v2035
          %v2083 = vpop.xlane.xlu0 %2082
          %2084 = vmax.xlane.f32.xlu0 %v2036
          %v2085 = vpop.xlane.xlu0 %2084
          %2086 = vmax.xlane.f32.xlu0 %v2037
          %v2087 = vpop.xlane.xlu0 %2086
          %2088 = vmax.xlane.f32.xlu0 %v2038
          %v2089 = vpop.xlane.xlu0 %2088
          %2090 = vmax.xlane.f32.xlu0 %v2039
          %v2091 = vpop.xlane.xlu0 %2090
          %2092 = vmax.xlane.f32.xlu0 %v2040
          %v2093 = vpop.xlane.xlu0 %2092
          %2094 = vmax.xlane.f32.xlu0 %v2041
          %v2095 = vpop.xlane.xlu0 %2094
          %2096 = vmax.xlane.f32.xlu0 %v2042
          %v2097 = vpop.xlane.xlu0 %2096
          %2098 = vmax.xlane.f32.xlu0 %v2043
          %v2099 = vpop.xlane.xlu0 %2098
          %2100 = vmax.xlane.f32.xlu0 %v2044
          %v2101 = vpop.xlane.xlu0 %2100
          %2102 = vmax.xlane.f32.xlu0 %v2045
          %v2103 = vpop.xlane.xlu0 %2102
          %2104 = vmax.xlane.f32.xlu0 %v2046
          %v2105 = vpop.xlane.xlu0 %2104
          %2106 = vmax.xlane.f32.xlu0 %v2047
          %v2107 = vpop.xlane.xlu0 %2106
          %2108 = vmax.xlane.f32.xlu0 %v2048
          %v2109 = vpop.xlane.xlu0 %2108
          %2110 = vmax.xlane.f32.xlu0 %v2049
          %v2111 = vpop.xlane.xlu0 %2110
          %2112 = vmax.xlane.f32.xlu0 %v2050
          %v2113 = vpop.xlane.xlu0 %2112
          %2114 = vmax.xlane.f32.xlu0 %v2051
          %v2115 = vpop.xlane.xlu0 %2114
          %v2116 = vsub.f32 %v2020, %v2053
          %v2117 = vsub.f32 %v2021, %v2055
          %v2118 = vsub.f32 %v2022, %v2057
          %v2119 = vsub.f32 %v2023, %v2059
          %v2120 = vsub.f32 %v2024, %v2061
          %v2121 = vsub.f32 %v2025, %v2063
          %v2122 = vsub.f32 %v2026, %v2065
          %v2123 = vsub.f32 %v2027, %v2067
          %v2124 = vsub.f32 %v2028, %v2069
          %v2125 = vsub.f32 %v2029, %v2071
          %v2126 = vsub.f32 %v2030, %v2073
          %v2127 = vsub.f32 %v2031, %v2075
          %v2128 = vsub.f32 %v2032, %v2077
          %v2129 = vsub.f32 %v2033, %v2079
          %v2130 = vsub.f32 %v2034, %v2081
          %v2131 = vsub.f32 %v2035, %v2083
          %v2132 = vsub.f32 %v2036, %v2085
          %v2133 = vsub.f32 %v2037, %v2087
          %v2134 = vsub.f32 %v2038, %v2089
          %v2135 = vsub.f32 %v2039, %v2091
          %v2136 = vsub.f32 %v2040, %v2093
          %v2137 = vsub.f32 %v2041, %v2095
          %v2138 = vsub.f32 %v2042, %v2097
          %v2139 = vsub.f32 %v2043, %v2099
          %v2140 = vsub.f32 %v2044, %v2101
          %v2141 = vsub.f32 %v2045, %v2103
          %v2142 = vsub.f32 %v2046, %v2105
          %v2143 = vsub.f32 %v2047, %v2107
          %v2144 = vsub.f32 %v2048, %v2109
          %v2145 = vsub.f32 %v2049, %v2111
          %v2146 = vsub.f32 %v2050, %v2113
          %v2147 = vsub.f32 %v2051, %v2115
          %v2148 = vmul.f32 %v2116, 1.442695
          %v2149 = vpow.pop %v2148
          %v2150 = vmul.f32 %v2117, 1.442695
          %v2151 = vpow.pop %v2150
          %v2152 = vmul.f32 %v2118, 1.442695
          %v2153 = vpow.pop %v2152
          %v2154 = vmul.f32 %v2119, 1.442695
          %v2155 = vpow.pop %v2154
          %v2156 = vmul.f32 %v2120, 1.442695
          %v2157 = vpow.pop %v2156
          %v2158 = vmul.f32 %v2121, 1.442695
          %v2159 = vpow.pop %v2158
          %v2160 = vmul.f32 %v2122, 1.442695
          %v2161 = vpow.pop %v2160
          %v2162 = vmul.f32 %v2123, 1.442695
          %v2163 = vpow.pop %v2162
          %v2164 = vmul.f32 %v2124, 1.442695
          %v2165 = vpow.pop %v2164
          %v2166 = vmul.f32 %v2125, 1.442695
          %v2167 = vpow.pop %v2166
          %v2168 = vmul.f32 %v2126, 1.442695
          %v2169 = vpow.pop %v2168
          %v2170 = vmul.f32 %v2127, 1.442695
          %v2171 = vpow.pop %v2170
          %v2172 = vmul.f32 %v2128, 1.442695
          %v2173 = vpow.pop %v2172
          %v2174 = vmul.f32 %v2129, 1.442695
          %v2175 = vpow.pop %v2174
          %v2176 = vmul.f32 %v2130, 1.442695
          %v2177 = vpow.pop %v2176
          %v2178 = vmul.f32 %v2131, 1.442695
          %v2179 = vpow.pop %v2178
          %v2180 = vmul.f32 %v2132, 1.442695
          %v2181 = vpow.pop %v2180
          %v2182 = vmul.f32 %v2133, 1.442695
          %v2183 = vpow.pop %v2182
          %v2184 = vmul.f32 %v2134, 1.442695
          %v2185 = vpow.pop %v2184
          %v2186 = vmul.f32 %v2135, 1.442695
          %v2187 = vpow.pop %v2186
          %v2188 = vmul.f32 %v2136, 1.442695
          %v2189 = vpow.pop %v2188
          %v2190 = vmul.f32 %v2137, 1.442695
          %v2191 = vpow.pop %v2190
          %v2192 = vmul.f32 %v2138, 1.442695
          %v2193 = vpow.pop %v2192
          %v2194 = vmul.f32 %v2139, 1.442695
          %v2195 = vpow.pop %v2194
          %v2196 = vmul.f32 %v2140, 1.442695
          %v2197 = vpow.pop %v2196
          %v2198 = vmul.f32 %v2141, 1.442695
          %v2199 = vpow.pop %v2198
          %v2200 = vmul.f32 %v2142, 1.442695
          %v2201 = vpow.pop %v2200
          %v2202 = vmul.f32 %v2143, 1.442695
          %v2203 = vpow.pop %v2202
          %v2204 = vmul.f32 %v2144, 1.442695
          %v2205 = vpow.pop %v2204
          %v2206 = vmul.f32 %v2145, 1.442695
          %v2207 = vpow.pop %v2206
          %v2208 = vmul.f32 %v2146, 1.442695
          %v2209 = vpow.pop %v2208
          %v2210 = vmul.f32 %v2147, 1.442695
          %v2211 = vpow.pop %v2210
          %2212 = vadd.xlane.f32.xlu0 %v2149
          %v2213 = vpop.xlane.xlu0 %2212
          %2214 = vadd.xlane.f32.xlu0 %v2151
          %v2215 = vpop.xlane.xlu0 %2214
          %2216 = vadd.xlane.f32.xlu0 %v2153
          %v2217 = vpop.xlane.xlu0 %2216
          %2218 = vadd.xlane.f32.xlu0 %v2155
          %v2219 = vpop.xlane.xlu0 %2218
          %2220 = vadd.xlane.f32.xlu0 %v2157
          %v2221 = vpop.xlane.xlu0 %2220
          %2222 = vadd.xlane.f32.xlu0 %v2159
          %v2223 = vpop.xlane.xlu0 %2222
          %2224 = vadd.xlane.f32.xlu0 %v2161
          %v2225 = vpop.xlane.xlu0 %2224
          %2226 = vadd.xlane.f32.xlu0 %v2163
          %v2227 = vpop.xlane.xlu0 %2226
          %2228 = vadd.xlane.f32.xlu0 %v2165
          %v2229 = vpop.xlane.xlu0 %2228
          %2230 = vadd.xlane.f32.xlu0 %v2167
          %v2231 = vpop.xlane.xlu0 %2230
          %2232 = vadd.xlane.f32.xlu0 %v2169
          %v2233 = vpop.xlane.xlu0 %2232
          %2234 = vadd.xlane.f32.xlu0 %v2171
          %v2235 = vpop.xlane.xlu0 %2234
          %2236 = vadd.xlane.f32.xlu0 %v2173
          %v2237 = vpop.xlane.xlu0 %2236
          %2238 = vadd.xlane.f32.xlu0 %v2175
          %v2239 = vpop.xlane.xlu0 %2238
          %2240 = vadd.xlane.f32.xlu0 %v2177
          %v2241 = vpop.xlane.xlu0 %2240
          %2242 = vadd.xlane.f32.xlu0 %v2179
          %v2243 = vpop.xlane.xlu0 %2242
          %2244 = vadd.xlane.f32.xlu0 %v2181
          %v2245 = vpop.xlane.xlu0 %2244
          %2246 = vadd.xlane.f32.xlu0 %v2183
          %v2247 = vpop.xlane.xlu0 %2246
          %2248 = vadd.xlane.f32.xlu0 %v2185
          %v2249 = vpop.xlane.xlu0 %2248
          %2250 = vadd.xlane.f32.xlu0 %v2187
          %v2251 = vpop.xlane.xlu0 %2250
          %2252 = vadd.xlane.f32.xlu0 %v2189
          %v2253 = vpop.xlane.xlu0 %2252
          %2254 = vadd.xlane.f32.xlu0 %v2191
          %v2255 = vpop.xlane.xlu0 %2254
          %2256 = vadd.xlane.f32.xlu0 %v2193
          %v2257 = vpop.xlane.xlu0 %2256
          %2258 = vadd.xlane.f32.xlu0 %v2195
          %v2259 = vpop.xlane.xlu0 %2258
          %2260 = vadd.xlane.f32.xlu0 %v2197
          %v2261 = vpop.xlane.xlu0 %2260
          %2262 = vadd.xlane.f32.xlu0 %v2199
          %v2263 = vpop.xlane.xlu0 %2262
          %2264 = vadd.xlane.f32.xlu0 %v2201
          %v2265 = vpop.xlane.xlu0 %2264
          %2266 = vadd.xlane.f32.xlu0 %v2203
          %v2267 = vpop.xlane.xlu0 %2266
          %2268 = vadd.xlane.f32.xlu0 %v2205
          %v2269 = vpop.xlane.xlu0 %2268
          %2270 = vadd.xlane.f32.xlu0 %v2207
          %v2271 = vpop.xlane.xlu0 %2270
          %2272 = vadd.xlane.f32.xlu0 %v2209
          %v2273 = vpop.xlane.xlu0 %2272
          %2274 = vadd.xlane.f32.xlu0 %v2211
          %v2275 = vpop.xlane.xlu0 %2274
          %v2276 = vlog2.pop %v2213
          %v2277 = vmul.f32 %v2276, 0.6931472
          %v2278 = vlog2.pop %v2215
          %v2279 = vmul.f32 %v2278, 0.6931472
          %v2280 = vlog2.pop %v2217
          %v2281 = vmul.f32 %v2280, 0.6931472
          %v2282 = vlog2.pop %v2219
          %v2283 = vmul.f32 %v2282, 0.6931472
          %v2284 = vlog2.pop %v2221
          %v2285 = vmul.f32 %v2284, 0.6931472
          %v2286 = vlog2.pop %v2223
          %v2287 = vmul.f32 %v2286, 0.6931472
          %v2288 = vlog2.pop %v2225
          %v2289 = vmul.f32 %v2288, 0.6931472
          %v2290 = vlog2.pop %v2227
          %v2291 = vmul.f32 %v2290, 0.6931472
          %v2292 = vlog2.pop %v2229
          %v2293 = vmul.f32 %v2292, 0.6931472
          %v2294 = vlog2.pop %v2231
          %v2295 = vmul.f32 %v2294, 0.6931472
          %v2296 = vlog2.pop %v2233
          %v2297 = vmul.f32 %v2296, 0.6931472
          %v2298 = vlog2.pop %v2235
          %v2299 = vmul.f32 %v2298, 0.6931472
          %v2300 = vlog2.pop %v2237
          %v2301 = vmul.f32 %v2300, 0.6931472
          %v2302 = vlog2.pop %v2239
          %v2303 = vmul.f32 %v2302, 0.6931472
          %v2304 = vlog2.pop %v2241
          %v2305 = vmul.f32 %v2304, 0.6931472
          %v2306 = vlog2.pop %v2243
          %v2307 = vmul.f32 %v2306, 0.6931472
          %v2308 = vlog2.pop %v2245
          %v2309 = vmul.f32 %v2308, 0.6931472
          %v2310 = vlog2.pop %v2247
          %v2311 = vmul.f32 %v2310, 0.6931472
          %v2312 = vlog2.pop %v2249
          %v2313 = vmul.f32 %v2312, 0.6931472
          %v2314 = vlog2.pop %v2251
          %v2315 = vmul.f32 %v2314, 0.6931472
          %v2316 = vlog2.pop %v2253
          %v2317 = vmul.f32 %v2316, 0.6931472
          %v2318 = vlog2.pop %v2255
          %v2319 = vmul.f32 %v2318, 0.6931472
          %v2320 = vlog2.pop %v2257
          %v2321 = vmul.f32 %v2320, 0.6931472
          %v2322 = vlog2.pop %v2259
          %v2323 = vmul.f32 %v2322, 0.6931472
          %v2324 = vlog2.pop %v2261
          %v2325 = vmul.f32 %v2324, 0.6931472
          %v2326 = vlog2.pop %v2263
          %v2327 = vmul.f32 %v2326, 0.6931472
          %v2328 = vlog2.pop %v2265
          %v2329 = vmul.f32 %v2328, 0.6931472
          %v2330 = vlog2.pop %v2267
          %v2331 = vmul.f32 %v2330, 0.6931472
          %v2332 = vlog2.pop %v2269
          %v2333 = vmul.f32 %v2332, 0.6931472
          %v2334 = vlog2.pop %v2271
          %v2335 = vmul.f32 %v2334, 0.6931472
          %v2336 = vlog2.pop %v2273
          %v2337 = vmul.f32 %v2336, 0.6931472
          %v2338 = vlog2.pop %v2275
          %v2339 = vmul.f32 %v2338, 0.6931472
          %v2340 = vsub.f32 %v2116, %v2277
          %v2341 = vsub.f32 %v2117, %v2279
          %v2342 = vsub.f32 %v2118, %v2281
          %v2343 = vsub.f32 %v2119, %v2283
          %v2344 = vsub.f32 %v2120, %v2285
          %v2345 = vsub.f32 %v2121, %v2287
          %v2346 = vsub.f32 %v2122, %v2289
          %v2347 = vsub.f32 %v2123, %v2291
          %v2348 = vsub.f32 %v2124, %v2293
          %v2349 = vsub.f32 %v2125, %v2295
          %v2350 = vsub.f32 %v2126, %v2297
          %v2351 = vsub.f32 %v2127, %v2299
          %v2352 = vsub.f32 %v2128, %v2301
          %v2353 = vsub.f32 %v2129, %v2303
          %v2354 = vsub.f32 %v2130, %v2305
          %v2355 = vsub.f32 %v2131, %v2307
          %v2356 = vsub.f32 %v2132, %v2309
          %v2357 = vsub.f32 %v2133, %v2311
          %v2358 = vsub.f32 %v2134, %v2313
          %v2359 = vsub.f32 %v2135, %v2315
          %v2360 = vsub.f32 %v2136, %v2317
          %v2361 = vsub.f32 %v2137, %v2319
          %v2362 = vsub.f32 %v2138, %v2321
          %v2363 = vsub.f32 %v2139, %v2323
          %v2364 = vsub.f32 %v2140, %v2325
          %v2365 = vsub.f32 %v2141, %v2327
          %v2366 = vsub.f32 %v2142, %v2329
          %v2367 = vsub.f32 %v2143, %v2331
          %v2368 = vsub.f32 %v2144, %v2333
          %v2369 = vsub.f32 %v2145, %v2335
          %v2370 = vsub.f32 %v2146, %v2337
          %v2371 = vsub.f32 %v2147, %v2339
          %2372 = vst [vmem:[%s256] sm:$0xff] %v2340
          %2373 = vst [vmem:[%s256 + $0x8] sm:$0xff] %v2341
          %2374 = vst [vmem:[%s256 + $0x10] sm:$0xff] %v2342
          %2375 = vst [vmem:[%s256 + $0x18] sm:$0xff] %v2343
          %2376 = vst [vmem:[%s256 + $0x20] sm:$0xff] %v2344
          %2377 = vst [vmem:[%s256 + $0x28] sm:$0xff] %v2345
          %2378 = vst [vmem:[%s256 + $0x30] sm:$0xff] %v2346
          %2379 = vst [vmem:[%s256 + $0x38] sm:$0xff] %v2347
          %2380 = vst [vmem:[%s256 + $0x40] sm:$0xff] %v2348
          %2381 = vst [vmem:[%s256 + $0x48] sm:$0xff] %v2349
          %2382 = vst [vmem:[%s256 + $0x50] sm:$0xff] %v2350
          %2383 = vst [vmem:[%s256 + $0x58] sm:$0xff] %v2351
          %2384 = vst [vmem:[%s256 + $0x60] sm:$0xff] %v2352
          %2385 = vst [vmem:[%s256 + $0x68] sm:$0xff] %v2353
          %2386 = vst [vmem:[%s256 + $0x70] sm:$0xff] %v2354
          %2387 = vst [vmem:[%s256 + $0x78] sm:$0xff] %v2355
          %2388 = vst [vmem:[%s256 + $0x80] sm:$0xff] %v2356
          %2389 = vst [vmem:[%s256 + $0x88] sm:$0xff] %v2357
          %2390 = vst [vmem:[%s256 + $0x90] sm:$0xff] %v2358
          %2391 = vst [vmem:[%s256 + $0x98] sm:$0xff] %v2359
          %2392 = vst [vmem:[%s256 + $0xa0] sm:$0xff] %v2360
          %2393 = vst [vmem:[%s256 + $0xa8] sm:$0xff] %v2361
          %2394 = vst [vmem:[%s256 + $0xb0] sm:$0xff] %v2362
          %2395 = vst [vmem:[%s256 + $0xb8] sm:$0xff] %v2363
          %2396 = vst [vmem:[%s256 + $0xc0] sm:$0xff] %v2364
          %2397 = vst [vmem:[%s256 + $0xc8] sm:$0xff] %v2365
          %2398 = vst [vmem:[%s256 + $0xd0] sm:$0xff] %v2366
          %2399 = vst [vmem:[%s256 + $0xd8] sm:$0xff] %v2367
          %2400 = vst [vmem:[%s256 + $0xe0] sm:$0xff] %v2368
          %2401 = vst [vmem:[%s256 + $0xe8] sm:$0xff] %v2369
          %2402 = vst [vmem:[%s256 + $0xf0] sm:$0xff] %v2370
          %2403 = vst [vmem:[%s256 + $0xf8] sm:$0xff] %v2371
        $region65: #{tpu_custom_call.1} parent=31 // pred_fallthru
          _
        %s2404 = sand.u32 %s119, 1
        %s2405 = scalar_lea.sflag [#allocation6], %s2404
        %s2406 = sand.u32 %s119, 1
        %s2407 = smul.addr %s2406, 256
        %s2408 = scalar_lea.vmem [#allocation10], %s2407
        // Predicated region
        $region66: #{tpu_custom_call.1} parent=31 // pred_check
          %p2409 = pneg %p129
        $region67: #{tpu_custom_call.1} parent=31 // pred_check_branch
          %2411 = sbr.rel (%p2409) target = $region69
        $region68: #{tpu_custom_call.1} parent=31 // pred_region
          %p2412 = scmp.eq.s32.totalorder %s26, 2
          %s2413 = scalar_select %p2412, %s27, 0
          %s2414 = smul.u32 32, %s2413
          %2416 = vsyncadd %s2405, 0
          %s2417 = smul.addr %s2414, 8
          %s2418 = scalar_lea.hbm %s4, %s2417
          %s2419 = sshll.u32 %s2408, 4
          %s2420 = int_to_ptr.vmem [resolvable:$true] %s2419
          %s2421 = sshll.u32 %s2418, 4
          %s2422 = int_to_ptr.hbm [resolvable:$true] %s2421
          %2427 = dma.vmem_to_hbm [thread:$0]  %s2420, 4096, %s2422, %s2405, 128, 128, 8
        $region69: #{tpu_custom_call.1} parent=31 // pred_fallthru
          _
      $region32: #{tpu_custom_call.1} parent=5 // pred_fallthru
        _
      %p2428 = scmp.le.s32.totalorder 2, %s17
      // Predicated region
      $region70: #{tpu_custom_call.1} parent=5 // pred_check
        %p2429 = pneg %p2428
      $region71: #{tpu_custom_call.1} parent=5 // pred_check_branch
        %2431 = sbr.rel (%p2429) target = $region73
      $region72: #{tpu_custom_call.1} parent=5 // pred_region
        %s2432 = ssub.s32 %s17, 2
        // Predicated region
        $region74: #{tpu_custom_call.1} parent=72 // pred_check
          %p2433 = pneg %p135
        $region75: #{tpu_custom_call.1} parent=72 // pred_check_branch
          %2435 = sbr.rel (%p2433) target = $region77
        $region76: #{tpu_custom_call.1} parent=72 // pred_region
          %s2436 = sand.u32 %s120, 1
          %s2437 = scalar_lea.sflag [#allocation6], %s2436
          %s2438 = sand.u32 %s120, 1
          %s2439 = smul.addr %s2438, 256
          %s2440 = scalar_lea.vmem [#allocation10], %s2439
          %2442 = dma.done %s2437, 4096
        $region77: #{tpu_custom_call.1} parent=72 // pred_fallthru
          _
      $region73: #{tpu_custom_call.1} parent=5 // pred_fallthru
        _
    $region6: #{tpu_custom_call.1} parent=1 // loop_footer
      %s21 = sadd.s32 1, %s17
    $region7: #{tpu_custom_call.1} parent=1 // loop_footer_branch
      %16 = sbr.rel target = $region3
    $region8: #{tpu_custom_call.1} parent=1 // loop_exit
      _
    %2443 = vsyncpa [#allocation5], 1
    %s2444 = scalar_lea.sflag [#allocation5], 1
    %2445 = vsyncpa %s2444, 1
    %2446 = vsyncpa [#allocation8], 1
    %s2447 = scalar_lea.sflag [#allocation8], 1
    %2448 = vsyncpa %s2447, 1
    %2449 = vsyncpa [#allocation6], 1
    %s2450 = scalar_lea.sflag [#allocation6], 1
    %2451 = vsyncpa %s2450, 1

</llo_original>
